<compile_context>
chip_gen: v5e
topology: v5e:2x2
jax: 0.10.0
libtpu: 0.0.40
codegen_flags: <defaults>
</compile_context>

<pallas_src>
import jax
import jax.numpy as jnp
import numpy as np
from jax.experimental import pallas as pl
from jax.experimental.pallas import tpu as pltpu


# --------------------------------------------------------------------------------------
# Kernel
# --------------------------------------------------------------------------------------
def _make_lstm_kernel(num_dir, chunk_t, nchunks, H):
    """Builds the fused (all-directions) chunked LSTM recurrence kernel.

    Ref layout (positional):
      inputs : xg_d (chunk_t, B, 4H) bf16  for d in range(num_dir)   gate order [i, f, o, g]
               whh  (num_dir, H, 4H) bf16
      outputs: y_d  (chunk_t, B, H)        for d in range(num_dir)
               h_n  (num_dir, B, H) f32
               c_n  (num_dir, B, H) f32
      scratch: h_d  (B, H) f32             for d in range(num_dir)
               c_d  (B, H) f32             for d in range(num_dir)
    """

    def kernel(*refs):
        xg_refs = refs[:num_dir]
        whh_ref = refs[num_dir]
        y_refs = refs[num_dir + 1: 2 * num_dir + 1]
        hn_ref = refs[2 * num_dir + 1]
        cn_ref = refs[2 * num_dir + 2]
        h_refs = refs[2 * num_dir + 3: 3 * num_dir + 3]
        c_refs = refs[3 * num_dir + 3: 4 * num_dir + 3]

        chunk = pl.program_id(0)

        # (h, c) state persists in scratch across the "arbitrary" chunk axis.
        @pl.when(chunk == 0)
        def _init():
            for d in range(num_dir):
                h_refs[d][...] = jnp.zeros_like(h_refs[d])
                c_refs[d][...] = jnp.zeros_like(c_refs[d])

        # Loop-invariant recurrent weights (bf16), loaded once per chunk.
        whh = [whh_ref[d] for d in range(num_dir)]

        def step(s):
            # Forward direction walks the chunk rows ascending; the backward direction walks
            # them descending (and its chunks are delivered in reverse by the BlockSpec
            # index_map), so globally it processes t = T-1 .. 0 and writes at natural t.
            rows = [s] + [chunk_t - 1 - s] * (num_dir - 1)

            # Phase 1: issue all recurrent matmuls back-to-back (independent dependency
            # chains -> MXU latency of one direction hides under the other).
            gates = []
            for d in range(num_dir):
                g = xg_refs[d][rows[d]].astype(jnp.float32) + jnp.dot(
                    h_refs[d][...].astype(jnp.bfloat16), whh[d],
                    preferred_element_type=jnp.float32)
                gates.append(g)

            # Phase 2: gate nonlinearities + state update (f32).
            for d in range(num_dir):
                g = gates[d]
                sig = jax.nn.sigmoid(g[:, :3 * H])     # one wide sigmoid covers [i, f, o]
                g_t = jnp.tanh(g[:, 3 * H:])           # candidate gate
                i_g = sig[:, 0:H]
                f_g = sig[:, H:2 * H]
                o_g = sig[:, 2 * H:3 * H]

                c_new = f_g * c_refs[d][...] + i_g * g_t
                h_new = o_g * jnp.tanh(c_new)

                h_refs[d][...] = h_new
                c_refs[d][...] = c_new
                # Per-step store into the chunk's VMEM output slab; HBM writeback happens
                # once per chunk as a dense block.
                y_refs[d][rows[d]] = h_new.astype(y_refs[d].dtype)

        if chunk_t <= 32:
            # Fully static row offsets (best for the LLO scheduler at small chunks).
            for s in range(chunk_t):
                step(s)
        else:
            def body(s, carry):
                step(s)
                return carry
            jax.lax.fori_loop(0, chunk_t, body, 0, unroll=8)

        # Final states written exactly once, on the last chunk.
        @pl.when(chunk == nchunks - 1)
        def _final():
            for d in range(num_dir):
                hn_ref[d] = h_refs[d][...]
                cn_ref[d] = c_refs[d][...]

    return kernel


# --------------------------------------------------------------------------------------
# Layer wrapper
# --------------------------------------------------------------------------------------
def _pick_chunk_t(T, B, H, num_dir, budget_bytes=16 << 20, max_chunk=512):
    """Largest divisor of T such that the double-buffered chunk slabs fit the VMEM budget."""
    per_step = num_dir * 2 * (B * 4 * H * 2 + B * H * 4)   # bf16 xg + (<=f32) y, 2 buffers
    cap = int(max(1, min(max_chunk, budget_bytes // max(per_step, 1))))
    best = 1
    for c in range(1, min(T, cap) + 1):
        if T % c == 0:
            best = c
    return best


def _input_projection(x_parts, wih, bias, num_dir):
    """Hoisted x @ W_ih^T + bias for all timesteps/directions (bf16 MXU, f32 accumulate).

    x_parts: list of time-major (T, B, Dk) slabs (the bidirectional concat of the previous
             layer is folded into this sum-of-einsums instead of materializing a concat).
    wih    : (num_dir, sum(Dk), 4H) bf16, gate order [i, f, o, g]
    bias   : (num_dir, 4H) f32
    Returns a list of num_dir arrays (T, B, 4H) in bf16.
    """
    xgs = []
    for d in range(num_dir):
        off = 0
        acc = None
        for xp in x_parts:
            dk = xp.shape[-1]
            wp = wih[d][off:off + dk]                       # (Dk, 4H) bf16, static slice
            off += dk
            term = jnp.einsum("tbd,dg->tbg", xp.astype(jnp.bfloat16), wp,
                              preferred_element_type=jnp.float32)
            acc = term if acc is None else acc + term
        xgs.append((acc + bias[d][None, None, :]).astype(jnp.bfloat16))
    return xgs


def lstm_layer_recurrence(xgs, whh, T, B, H, num_dir, out_dtype):
    """Run the sequential LSTM recurrence for one layer (all directions fused).

    xgs : list of num_dir arrays (T, B, 4H) bf16 (precomputed input projection + bias)
    whh : (num_dir, H, 4H) bf16 recurrent weights, gate order [i, f, o, g]
    Returns (ys list of (T, B, H) out_dtype, h_n (num_dir, B, H) f32, c_n (num_dir, B, H) f32).
    """
    chunk_t = _pick_chunk_t(T, B, H, num_dir)
    nchunks = T // chunk_t
    kernel = _make_lstm_kernel(num_dir, chunk_t, nchunks, H)

    def fwd_map(c):
        return (c, 0, 0)

    def bwd_map(c):
        return (nchunks - 1 - c, 0, 0)

    dir_maps = [fwd_map, bwd_map][:num_dir]

    in_specs = [pl.BlockSpec((chunk_t, B, 4 * H), m) for m in dir_maps]
    in_specs.append(pl.BlockSpec((num_dir, H, 4 * H), lambda c: (0, 0, 0)))

    out_specs = [pl.BlockSpec((chunk_t, B, H), m) for m in dir_maps]
    out_specs += [pl.BlockSpec((num_dir, B, H), lambda c: (0, 0, 0))] * 2

    out_shapes = tuple(
        [jax.ShapeDtypeStruct((T, B, H), out_dtype) for _ in range(num_dir)]
        + [jax.ShapeDtypeStruct((num_dir, B, H), jnp.float32)] * 2)

    results = pl.pallas_call(
        kernel,
        out_shape=out_shapes,
        grid_spec=pltpu.PrefetchScalarGridSpec(
            num_scalar_prefetch=0,
            grid=(nchunks,),
            in_specs=in_specs,
            out_specs=out_specs,
            scratch_shapes=(
                [pltpu.VMEM((B, H), jnp.float32) for _ in range(num_dir)]     # h state
                + [pltpu.VMEM((B, H), jnp.float32) for _ in range(num_dir)]   # c state
            ),
        ),
        compiler_params=pltpu.CompilerParams(
            dimension_semantics=("arbitrary",),          # chunk axis carries (h, c) state
            vmem_limit_bytes=48 * 1024 * 1024),
    )(*xgs, whh)

    ys = list(results[:num_dir])
    h_n = results[num_dir]
    c_n = results[num_dir + 1]
    return ys, h_n, c_n


# --------------------------------------------------------------------------------------
# Parameter init / prep (PyTorch-compatible semantics)
# --------------------------------------------------------------------------------------
def _init_lstm_params(key, in_dim, hidden_dim):
    """PyTorch-style uniform(-1/sqrt(H), 1/sqrt(H)) init, deterministic."""
    k = 1.0 / np.sqrt(hidden_dim)
    k1, k2, k3, k4 = jax.random.split(key, 4)
    w_ih = jax.random.uniform(k1, (4 * hidden_dim, in_dim), jnp.float32, -k, k)
    w_hh = jax.random.uniform(k2, (4 * hidden_dim, hidden_dim), jnp.float32, -k, k)
    b_ih = jax.random.uniform(k3, (4 * hidden_dim,), jnp.float32, -k, k)
    b_hh = jax.random.uniform(k4, (4 * hidden_dim,), jnp.float32, -k, k)
    return w_ih, w_hh, b_ih, b_hh


def _prep_direction(w_ih, w_hh, b_ih, b_hh):
    """Transpose weights and reorder gate columns from PyTorch [i,f,g,o] to [i,f,o,g]."""
    H = w_hh.shape[1]
    perm = jnp.concatenate([jnp.arange(0, 2 * H),          # i, f
                            jnp.arange(3 * H, 4 * H),      # o
                            jnp.arange(2 * H, 3 * H)])     # g
    wih_t = jnp.transpose(w_ih[perm])        # (Din, 4H)
    whh_t = jnp.transpose(w_hh[perm])        # (H, 4H)
    bias = (b_ih + b_hh)[perm]               # (4H,)
    return wih_t, whh_t, bias


class StackLSTMPallas:
    """JAX/Pallas equivalent of absa.models.nn.lstm.StackLSTM forward pass."""

    def __init__(self, layers_dim, bidirectional, key):
        layers_dim = [int(d) for d in np.asarray(layers_dim)]
        self.bidirectional = bool(bidirectional)
        self.num_dir = 2 if self.bidirectional else 1

        if self.bidirectional:
            in_dims = [layers_dim[0]] + [2 * d for d in layers_dim[1:-1]]
        else:
            in_dims = layers_dim[:-1]
        out_dims = layers_dim[1:]

        self.layers = []
        for in_dim, out_dim in zip(in_dims, out_dims):
            wihs, whhs, biases = [], [], []
            for _ in range(self.num_dir):
                key, k = jax.random.split(key)
                w_ih, w_hh, b_ih, b_hh = _init_lstm_params(k, in_dim, out_dim)
                wih_t, whh_t, bias = _prep_direction(w_ih, w_hh, b_ih, b_hh)
                wihs.append(wih_t)
                whhs.append(whh_t)
                biases.append(bias)
            self.layers.append((
                jnp.stack(wihs).astype(jnp.bfloat16),    # (num_dir, Din, 4H) bf16 (MXU-native)
                jnp.stack(whhs).astype(jnp.bfloat16),    # (num_dir, H, 4H)   bf16
                jnp.stack(biases),                       # (num_dir, 4H)      f32
                out_dim))

    def __call__(self, x_btd):
        B, T, _ = x_btd.shape
        # One transpose to time-major at the input; activations stay (T, B, D) across layers.
        x_parts = [jnp.transpose(x_btd, (1, 0, 2))]
        ys, h_n, c_n = None, None, None
        n_layers = len(self.layers)
        for li, (wih, whh, bias, H) in enumerate(self.layers):
            last = (li == n_layers - 1)
            # Hoisted input projection (no recurrence) — one big bf16 matmul per direction.
            xgs = _input_projection(x_parts, wih, bias, self.num_dir)
            ys, h_n, c_n = lstm_layer_recurrence(
                xgs, whh, T, B, H, self.num_dir,
                out_dtype=jnp.float32 if last else jnp.bfloat16)
            # Next layer consumes the per-direction slabs directly (concat folded into einsum).
            x_parts = list(ys)

        out_tbd = ys[0] if self.num_dir == 1 else jnp.concatenate(ys, axis=-1)
        return jnp.transpose(out_tbd, (1, 0, 2)), (h_n, c_n)


if __name__ == "__main__":
    key = jax.random.PRNGKey(0)
    key, k_model, k_x = jax.random.split(key, 3)

    layers_dim = np.array([16, 32, 32])   # in=16, hidden sizes 32, 32
    bidirectional = True
    B, T = 2, 8

    model = StackLSTMPallas(layers_dim, bidirectional, k_model)
    x = jax.random.normal(k_x, (B, T, int(layers_dim[0])), dtype=jnp.float32)

    output, (h_n, c_n) = model(x)
    jax.block_until_ready((output, h_n, c_n))

    num_dir = 2 if bidirectional else 1
    assert output.shape == (B, T, 32 * num_dir), output.shape
    assert h_n.shape == (num_dir, B, 32), h_n.shape
    assert c_n.shape == (num_dir, B, 32), c_n.shape
    assert output.dtype == jnp.float32
    assert bool(jnp.all(jnp.isfinite(output)))
    assert bool(jnp.all(jnp.isfinite(h_n))) and bool(jnp.all(jnp.isfinite(c_n)))
    print("KERNEL_OK")
</pallas_src>

<mosaic_0001>
module attributes {stable_mosaic.version = 11 : i64} {
  func.func @kernel(%arg0: i32, %arg1: memref<8x2x128xbf16, #tpu.memory_space<vmem>>, %arg2: memref<8x2x128xbf16, #tpu.memory_space<vmem>>, %arg3: memref<2x32x128xbf16, #tpu.memory_space<vmem>>, %arg4: memref<8x2x32xbf16, #tpu.memory_space<vmem>>, %arg5: memref<8x2x32xbf16, #tpu.memory_space<vmem>>, %arg6: memref<2x2x32xf32, #tpu.memory_space<vmem>>, %arg7: memref<2x2x32xf32, #tpu.memory_space<vmem>>, %arg8: memref<2x32xf32, #tpu.memory_space<vmem>>, %arg9: memref<2x32xf32, #tpu.memory_space<vmem>>, %arg10: memref<2x32xf32, #tpu.memory_space<vmem>>, %arg11: memref<2x32xf32, #tpu.memory_space<vmem>>) attributes {dimension_semantics = [#tpu.dimension_semantics<arbitrary>], iteration_bounds = array<i64: 1>, scalar_prefetch = 0 : i64, scratch_operands = 4 : i64, tpu.core_type = #tpu.core_type<tc>, window_params = [{transform_indices = @transform_0, window_bounds = array<i64: 8, 2, 128>}, {transform_indices = @transform_1, window_bounds = array<i64: 8, 2, 128>}, {pipeline_mode = #tpu.pipeline_mode<synchronous>, transform_indices = @transform_2, window_bounds = array<i64: 2, 32, 128>}, {transform_indices = @transform_3, window_bounds = array<i64: 8, 2, 32>}, {transform_indices = @transform_4, window_bounds = array<i64: 8, 2, 32>}, {pipeline_mode = #tpu.pipeline_mode<synchronous>, transform_indices = @transform_5, window_bounds = array<i64: 2, 2, 32>}, {pipeline_mode = #tpu.pipeline_mode<synchronous>, transform_indices = @transform_6, window_bounds = array<i64: 2, 2, 32>}]} {
    %c0_i32 = arith.constant 0 : i32
    %0 = arith.cmpi eq, %arg0, %c0_i32 : i32
    %1 = arith.extui %0 : i1 to i32
    %c0_i32_0 = arith.constant 0 : i32
    %2 = arith.cmpi ne, %1, %c0_i32_0 : i32
    scf.if %2 {
      %cst_256 = arith.constant 0.000000e+00 : f32
      %490 = vector.broadcast %cst_256 : f32 to vector<2x32xf32>
      %c0_257 = arith.constant 0 : index
      %c0_258 = arith.constant 0 : index
      %491 = vector.load %arg8[%c0_257, %c0_258] : memref<2x32xf32, #tpu.memory_space<vmem>>, vector<2x32xf32>
      tpu.vector_store %arg8[%c0_257, %c0_258], %490 {strides = array<i32>} : memref<2x32xf32, #tpu.memory_space<vmem>>, vector<2x32xf32>,
      %cst_259 = arith.constant 0.000000e+00 : f32
      %492 = vector.broadcast %cst_259 : f32 to vector<2x32xf32>
      %c0_260 = arith.constant 0 : index
      %c0_261 = arith.constant 0 : index
      %493 = vector.load %arg10[%c0_260, %c0_261] : memref<2x32xf32, #tpu.memory_space<vmem>>, vector<2x32xf32>
      tpu.vector_store %arg10[%c0_260, %c0_261], %492 {strides = array<i32>} : memref<2x32xf32, #tpu.memory_space<vmem>>, vector<2x32xf32>,
      %cst_262 = arith.constant 0.000000e+00 : f32
      %494 = vector.broadcast %cst_262 : f32 to vector<2x32xf32>
      %c0_263 = arith.constant 0 : index
      %c0_264 = arith.constant 0 : index
      %495 = vector.load %arg9[%c0_263, %c0_264] : memref<2x32xf32, #tpu.memory_space<vmem>>, vector<2x32xf32>
      tpu.vector_store %arg9[%c0_263, %c0_264], %494 {strides = array<i32>} : memref<2x32xf32, #tpu.memory_space<vmem>>, vector<2x32xf32>,
      %cst_265 = arith.constant 0.000000e+00 : f32
      %496 = vector.broadcast %cst_265 : f32 to vector<2x32xf32>
      %c0_266 = arith.constant 0 : index
      %c0_267 = arith.constant 0 : index
      %497 = vector.load %arg11[%c0_266, %c0_267] : memref<2x32xf32, #tpu.memory_space<vmem>>, vector<2x32xf32>
      tpu.vector_store %arg11[%c0_266, %c0_267], %496 {strides = array<i32>} : memref<2x32xf32, #tpu.memory_space<vmem>>, vector<2x32xf32>,
    } else {
    }
    %c0 = arith.constant 0 : index
    %c0_1 = arith.constant 0 : index
    %c0_2 = arith.constant 0 : index
    %3 = vector.load %arg3[%c0, %c0_1, %c0_2] : memref<2x32x128xbf16, #tpu.memory_space<vmem>>, vector<1x32x128xbf16>
    %4 = vector.shape_cast %3 : vector<1x32x128xbf16> to vector<32x128xbf16>
    %c1 = arith.constant 1 : index
    %c0_3 = arith.constant 0 : index
    %c0_4 = arith.constant 0 : index
    %5 = vector.load %arg3[%c1, %c0_3, %c0_4] : memref<2x32x128xbf16, #tpu.memory_space<vmem>>, vector<1x32x128xbf16>
    %6 = vector.shape_cast %5 : vector<1x32x128xbf16> to vector<32x128xbf16>
    %c0_5 = arith.constant 0 : index
    %c0_6 = arith.constant 0 : index
    %c0_7 = arith.constant 0 : index
    %7 = vector.load %arg1[%c0_5, %c0_6, %c0_7] : memref<8x2x128xbf16, #tpu.memory_space<vmem>>, vector<1x2x128xbf16>
    %8 = vector.shape_cast %7 : vector<1x2x128xbf16> to vector<2x128xbf16>
    %9 = arith.extf %8 : vector<2x128xbf16> to vector<2x128xf32>
    %c0_8 = arith.constant 0 : index
    %c0_9 = arith.constant 0 : index
    %10 = vector.load %arg8[%c0_8, %c0_9] : memref<2x32xf32, #tpu.memory_space<vmem>>, vector<2x32xf32>
    %11 = arith.truncf %10 : vector<2x32xf32> to vector<2x32xbf16>
    %cst = arith.constant dense<0.000000e+00> : vector<2x128xf32>
    %12 = tpu.matmul %11, %4, %cst {dimension_numbers = #tpu.dot_dimension_numbers<[1], [0], [0], [1], [0, 0, 1, 1], [], []>} : vector<2x32xbf16>, vector<32x128xbf16>, vector<2x128xf32> -> vector<2x128xf32>
    %13 = arith.addf %9, %12 : vector<2x128xf32>
    %c7 = arith.constant 7 : index
    %c0_10 = arith.constant 0 : index
    %c0_11 = arith.constant 0 : index
    %14 = vector.load %arg2[%c7, %c0_10, %c0_11] : memref<8x2x128xbf16, #tpu.memory_space<vmem>>, vector<1x2x128xbf16>
    %15 = vector.shape_cast %14 : vector<1x2x128xbf16> to vector<2x128xbf16>
    %16 = arith.extf %15 : vector<2x128xbf16> to vector<2x128xf32>
    %c0_12 = arith.constant 0 : index
    %c0_13 = arith.constant 0 : index
    %17 = vector.load %arg9[%c0_12, %c0_13] : memref<2x32xf32, #tpu.memory_space<vmem>>, vector<2x32xf32>
    %18 = arith.truncf %17 : vector<2x32xf32> to vector<2x32xbf16>
    %cst_14 = arith.constant dense<0.000000e+00> : vector<2x128xf32>
    %19 = tpu.matmul %18, %6, %cst_14 {dimension_numbers = #tpu.dot_dimension_numbers<[1], [0], [0], [1], [0, 0, 1, 1], [], []>} : vector<2x32xbf16>, vector<32x128xbf16>, vector<2x128xf32> -> vector<2x128xf32>
    %20 = arith.addf %16, %19 : vector<2x128xf32>
    %21 = vector.extract_strided_slice %13 {offsets = [0, 0], sizes = [2, 96], strides = [1, 1]} : vector<2x128xf32> to vector<2x96xf32>
    %22 = arith.negf %21 : vector<2x96xf32>
    %23 = math.exp %22 : vector<2x96xf32>
    %cst_15 = arith.constant 1.000000e+00 : f32
    %24 = vector.broadcast %cst_15 : f32 to vector<2x96xf32>
    %25 = arith.addf %24, %23 : vector<2x96xf32>
    %26 = arith.divf %24, %25 : vector<2x96xf32>
    %27 = vector.extract_strided_slice %13 {offsets = [0, 96], sizes = [2, 32], strides = [1, 1]} : vector<2x128xf32> to vector<2x32xf32>
    %28 = math.tanh %27 : vector<2x32xf32>
    %29 = vector.extract_strided_slice %26 {offsets = [0, 0], sizes = [2, 32], strides = [1, 1]} : vector<2x96xf32> to vector<2x32xf32>
    %30 = vector.extract_strided_slice %26 {offsets = [0, 32], sizes = [2, 32], strides = [1, 1]} : vector<2x96xf32> to vector<2x32xf32>
    %31 = vector.extract_strided_slice %26 {offsets = [0, 64], sizes = [2, 32], strides = [1, 1]} : vector<2x96xf32> to vector<2x32xf32>
    %c0_16 = arith.constant 0 : index
    %c0_17 = arith.constant 0 : index
    %32 = vector.load %arg10[%c0_16, %c0_17] : memref<2x32xf32, #tpu.memory_space<vmem>>, vector<2x32xf32>
    %33 = arith.mulf %30, %32 : vector<2x32xf32>
    %34 = arith.mulf %29, %28 : vector<2x32xf32>
    %35 = arith.addf %33, %34 : vector<2x32xf32>
    %36 = math.tanh %35 : vector<2x32xf32>
    %37 = arith.mulf %31, %36 : vector<2x32xf32>
    %c0_18 = arith.constant 0 : index
    %c0_19 = arith.constant 0 : index
    %38 = vector.load %arg8[%c0_18, %c0_19] : memref<2x32xf32, #tpu.memory_space<vmem>>, vector<2x32xf32>
    tpu.vector_store %arg8[%c0_18, %c0_19], %37 {strides = array<i32>} : memref<2x32xf32, #tpu.memory_space<vmem>>, vector<2x32xf32>,
    %c0_20 = arith.constant 0 : index
    %c0_21 = arith.constant 0 : index
    %39 = vector.load %arg10[%c0_20, %c0_21] : memref<2x32xf32, #tpu.memory_space<vmem>>, vector<2x32xf32>
    tpu.vector_store %arg10[%c0_20, %c0_21], %35 {strides = array<i32>} : memref<2x32xf32, #tpu.memory_space<vmem>>, vector<2x32xf32>,
    %40 = arith.truncf %37 : vector<2x32xf32> to vector<2x32xbf16>
    %c0_22 = arith.constant 0 : index
    %c0_23 = arith.constant 0 : index
    %c0_24 = arith.constant 0 : index
    %41 = vector.load %arg4[%c0_22, %c0_23, %c0_24] : memref<8x2x32xbf16, #tpu.memory_space<vmem>>, vector<1x2x32xbf16>
    %42 = vector.shape_cast %41 : vector<1x2x32xbf16> to vector<2x32xbf16>
    %43 = vector.shape_cast %40 : vector<2x32xbf16> to vector<1x2x32xbf16>
    tpu.vector_store %arg4[%c0_22, %c0_23, %c0_24], %43 {strides = array<i32>} : memref<8x2x32xbf16, #tpu.memory_space<vmem>>, vector<1x2x32xbf16>,
    %44 = vector.extract_strided_slice %20 {offsets = [0, 0], sizes = [2, 96], strides = [1, 1]} : vector<2x128xf32> to vector<2x96xf32>
    %45 = arith.negf %44 : vector<2x96xf32>
    %46 = math.exp %45 : vector<2x96xf32>
    %cst_25 = arith.constant 1.000000e+00 : f32
    %47 = vector.broadcast %cst_25 : f32 to vector<2x96xf32>
    %48 = arith.addf %47, %46 : vector<2x96xf32>
    %49 = arith.divf %47, %48 : vector<2x96xf32>
    %50 = vector.extract_strided_slice %20 {offsets = [0, 96], sizes = [2, 32], strides = [1, 1]} : vector<2x128xf32> to vector<2x32xf32>
    %51 = math.tanh %50 : vector<2x32xf32>
    %52 = vector.extract_strided_slice %49 {offsets = [0, 0], sizes = [2, 32], strides = [1, 1]} : vector<2x96xf32> to vector<2x32xf32>
    %53 = vector.extract_strided_slice %49 {offsets = [0, 32], sizes = [2, 32], strides = [1, 1]} : vector<2x96xf32> to vector<2x32xf32>
    %54 = vector.extract_strided_slice %49 {offsets = [0, 64], sizes = [2, 32], strides = [1, 1]} : vector<2x96xf32> to vector<2x32xf32>
    %c0_26 = arith.constant 0 : index
    %c0_27 = arith.constant 0 : index
    %55 = vector.load %arg11[%c0_26, %c0_27] : memref<2x32xf32, #tpu.memory_space<vmem>>, vector<2x32xf32>
    %56 = arith.mulf %53, %55 : vector<2x32xf32>
    %57 = arith.mulf %52, %51 : vector<2x32xf32>
    %58 = arith.addf %56, %57 : vector<2x32xf32>
    %59 = math.tanh %58 : vector<2x32xf32>
    %60 = arith.mulf %54, %59 : vector<2x32xf32>
    %c0_28 = arith.constant 0 : index
    %c0_29 = arith.constant 0 : index
    %61 = vector.load %arg9[%c0_28, %c0_29] : memref<2x32xf32, #tpu.memory_space<vmem>>, vector<2x32xf32>
    tpu.vector_store %arg9[%c0_28, %c0_29], %60 {strides = array<i32>} : memref<2x32xf32, #tpu.memory_space<vmem>>, vector<2x32xf32>,
    %c0_30 = arith.constant 0 : index
    %c0_31 = arith.constant 0 : index
    %62 = vector.load %arg11[%c0_30, %c0_31] : memref<2x32xf32, #tpu.memory_space<vmem>>, vector<2x32xf32>
    tpu.vector_store %arg11[%c0_30, %c0_31], %58 {strides = array<i32>} : memref<2x32xf32, #tpu.memory_space<vmem>>, vector<2x32xf32>,
    %63 = arith.truncf %60 : vector<2x32xf32> to vector<2x32xbf16>
    %c7_32 = arith.constant 7 : index
    %c0_33 = arith.constant 0 : index
    %c0_34 = arith.constant 0 : index
    %64 = vector.load %arg5[%c7_32, %c0_33, %c0_34] : memref<8x2x32xbf16, #tpu.memory_space<vmem>>, vector<1x2x32xbf16>
    %65 = vector.shape_cast %64 : vector<1x2x32xbf16> to vector<2x32xbf16>
    %66 = vector.shape_cast %63 : vector<2x32xbf16> to vector<1x2x32xbf16>
    tpu.vector_store %arg5[%c7_32, %c0_33, %c0_34], %66 {strides = array<i32>} : memref<8x2x32xbf16, #tpu.memory_space<vmem>>, vector<1x2x32xbf16>,
    %c1_35 = arith.constant 1 : index
    %c0_36 = arith.constant 0 : index
    %c0_37 = arith.constant 0 : index
    %67 = vector.load %arg1[%c1_35, %c0_36, %c0_37] : memref<8x2x128xbf16, #tpu.memory_space<vmem>>, vector<1x2x128xbf16>
    %68 = vector.shape_cast %67 : vector<1x2x128xbf16> to vector<2x128xbf16>
    %69 = arith.extf %68 : vector<2x128xbf16> to vector<2x128xf32>
    %c0_38 = arith.constant 0 : index
    %c0_39 = arith.constant 0 : index
    %70 = vector.load %arg8[%c0_38, %c0_39] : memref<2x32xf32, #tpu.memory_space<vmem>>, vector<2x32xf32>
    %71 = arith.truncf %70 : vector<2x32xf32> to vector<2x32xbf16>
    %cst_40 = arith.constant dense<0.000000e+00> : vector<2x128xf32>
    %72 = tpu.matmul %71, %4, %cst_40 {dimension_numbers = #tpu.dot_dimension_numbers<[1], [0], [0], [1], [0, 0, 1, 1], [], []>} : vector<2x32xbf16>, vector<32x128xbf16>, vector<2x128xf32> -> vector<2x128xf32>
    %73 = arith.addf %69, %72 : vector<2x128xf32>
    %c6 = arith.constant 6 : index
    %c0_41 = arith.constant 0 : index
    %c0_42 = arith.constant 0 : index
    %74 = vector.load %arg2[%c6, %c0_41, %c0_42] : memref<8x2x128xbf16, #tpu.memory_space<vmem>>, vector<1x2x128xbf16>
    %75 = vector.shape_cast %74 : vector<1x2x128xbf16> to vector<2x128xbf16>
    %76 = arith.extf %75 : vector<2x128xbf16> to vector<2x128xf32>
    %c0_43 = arith.constant 0 : index
    %c0_44 = arith.constant 0 : index
    %77 = vector.load %arg9[%c0_43, %c0_44] : memref<2x32xf32, #tpu.memory_space<vmem>>, vector<2x32xf32>
    %78 = arith.truncf %77 : vector<2x32xf32> to vector<2x32xbf16>
    %cst_45 = arith.constant dense<0.000000e+00> : vector<2x128xf32>
    %79 = tpu.matmul %78, %6, %cst_45 {dimension_numbers = #tpu.dot_dimension_numbers<[1], [0], [0], [1], [0, 0, 1, 1], [], []>} : vector<2x32xbf16>, vector<32x128xbf16>, vector<2x128xf32> -> vector<2x128xf32>
    %80 = arith.addf %76, %79 : vector<2x128xf32>
    %81 = vector.extract_strided_slice %73 {offsets = [0, 0], sizes = [2, 96], strides = [1, 1]} : vector<2x128xf32> to vector<2x96xf32>
    %82 = arith.negf %81 : vector<2x96xf32>
    %83 = math.exp %82 : vector<2x96xf32>
    %cst_46 = arith.constant 1.000000e+00 : f32
    %84 = vector.broadcast %cst_46 : f32 to vector<2x96xf32>
    %85 = arith.addf %84, %83 : vector<2x96xf32>
    %86 = arith.divf %84, %85 : vector<2x96xf32>
    %87 = vector.extract_strided_slice %73 {offsets = [0, 96], sizes = [2, 32], strides = [1, 1]} : vector<2x128xf32> to vector<2x32xf32>
    %88 = math.tanh %87 : vector<2x32xf32>
    %89 = vector.extract_strided_slice %86 {offsets = [0, 0], sizes = [2, 32], strides = [1, 1]} : vector<2x96xf32> to vector<2x32xf32>
    %90 = vector.extract_strided_slice %86 {offsets = [0, 32], sizes = [2, 32], strides = [1, 1]} : vector<2x96xf32> to vector<2x32xf32>
    %91 = vector.extract_strided_slice %86 {offsets = [0, 64], sizes = [2, 32], strides = [1, 1]} : vector<2x96xf32> to vector<2x32xf32>
    %c0_47 = arith.constant 0 : index
    %c0_48 = arith.constant 0 : index
    %92 = vector.load %arg10[%c0_47, %c0_48] : memref<2x32xf32, #tpu.memory_space<vmem>>, vector<2x32xf32>
    %93 = arith.mulf %90, %92 : vector<2x32xf32>
    %94 = arith.mulf %89, %88 : vector<2x32xf32>
    %95 = arith.addf %93, %94 : vector<2x32xf32>
    %96 = math.tanh %95 : vector<2x32xf32>
    %97 = arith.mulf %91, %96 : vector<2x32xf32>
    %c0_49 = arith.constant 0 : index
    %c0_50 = arith.constant 0 : index
    %98 = vector.load %arg8[%c0_49, %c0_50] : memref<2x32xf32, #tpu.memory_space<vmem>>, vector<2x32xf32>
    tpu.vector_store %arg8[%c0_49, %c0_50], %97 {strides = array<i32>} : memref<2x32xf32, #tpu.memory_space<vmem>>, vector<2x32xf32>,
    %c0_51 = arith.constant 0 : index
    %c0_52 = arith.constant 0 : index
    %99 = vector.load %arg10[%c0_51, %c0_52] : memref<2x32xf32, #tpu.memory_space<vmem>>, vector<2x32xf32>
    tpu.vector_store %arg10[%c0_51, %c0_52], %95 {strides = array<i32>} : memref<2x32xf32, #tpu.memory_space<vmem>>, vector<2x32xf32>,
    %100 = arith.truncf %97 : vector<2x32xf32> to vector<2x32xbf16>
    %c1_53 = arith.constant 1 : index
    %c0_54 = arith.constant 0 : index
    %c0_55 = arith.constant 0 : index
    %101 = vector.load %arg4[%c1_53, %c0_54, %c0_55] : memref<8x2x32xbf16, #tpu.memory_space<vmem>>, vector<1x2x32xbf16>
    %102 = vector.shape_cast %101 : vector<1x2x32xbf16> to vector<2x32xbf16>
    %103 = vector.shape_cast %100 : vector<2x32xbf16> to vector<1x2x32xbf16>
    tpu.vector_store %arg4[%c1_53, %c0_54, %c0_55], %103 {strides = array<i32>} : memref<8x2x32xbf16, #tpu.memory_space<vmem>>, vector<1x2x32xbf16>,
    %104 = vector.extract_strided_slice %80 {offsets = [0, 0], sizes = [2, 96], strides = [1, 1]} : vector<2x128xf32> to vector<2x96xf32>
    %105 = arith.negf %104 : vector<2x96xf32>
    %106 = math.exp %105 : vector<2x96xf32>
    %cst_56 = arith.constant 1.000000e+00 : f32
    %107 = vector.broadcast %cst_56 : f32 to vector<2x96xf32>
    %108 = arith.addf %107, %106 : vector<2x96xf32>
    %109 = arith.divf %107, %108 : vector<2x96xf32>
    %110 = vector.extract_strided_slice %80 {offsets = [0, 96], sizes = [2, 32], strides = [1, 1]} : vector<2x128xf32> to vector<2x32xf32>
    %111 = math.tanh %110 : vector<2x32xf32>
    %112 = vector.extract_strided_slice %109 {offsets = [0, 0], sizes = [2, 32], strides = [1, 1]} : vector<2x96xf32> to vector<2x32xf32>
    %113 = vector.extract_strided_slice %109 {offsets = [0, 32], sizes = [2, 32], strides = [1, 1]} : vector<2x96xf32> to vector<2x32xf32>
    %114 = vector.extract_strided_slice %109 {offsets = [0, 64], sizes = [2, 32], strides = [1, 1]} : vector<2x96xf32> to vector<2x32xf32>
    %c0_57 = arith.constant 0 : index
    %c0_58 = arith.constant 0 : index
    %115 = vector.load %arg11[%c0_57, %c0_58] : memref<2x32xf32, #tpu.memory_space<vmem>>, vector<2x32xf32>
    %116 = arith.mulf %113, %115 : vector<2x32xf32>
    %117 = arith.mulf %112, %111 : vector<2x32xf32>
    %118 = arith.addf %116, %117 : vector<2x32xf32>
    %119 = math.tanh %118 : vector<2x32xf32>
    %120 = arith.mulf %114, %119 : vector<2x32xf32>
    %c0_59 = arith.constant 0 : index
    %c0_60 = arith.constant 0 : index
    %121 = vector.load %arg9[%c0_59, %c0_60] : memref<2x32xf32, #tpu.memory_space<vmem>>, vector<2x32xf32>
    tpu.vector_store %arg9[%c0_59, %c0_60], %120 {strides = array<i32>} : memref<2x32xf32, #tpu.memory_space<vmem>>, vector<2x32xf32>,
    %c0_61 = arith.constant 0 : index
    %c0_62 = arith.constant 0 : index
    %122 = vector.load %arg11[%c0_61, %c0_62] : memref<2x32xf32, #tpu.memory_space<vmem>>, vector<2x32xf32>
    tpu.vector_store %arg11[%c0_61, %c0_62], %118 {strides = array<i32>} : memref<2x32xf32, #tpu.memory_space<vmem>>, vector<2x32xf32>,
    %123 = arith.truncf %120 : vector<2x32xf32> to vector<2x32xbf16>
    %c6_63 = arith.constant 6 : index
    %c0_64 = arith.constant 0 : index
    %c0_65 = arith.constant 0 : index
    %124 = vector.load %arg5[%c6_63, %c0_64, %c0_65] : memref<8x2x32xbf16, #tpu.memory_space<vmem>>, vector<1x2x32xbf16>
    %125 = vector.shape_cast %124 : vector<1x2x32xbf16> to vector<2x32xbf16>
    %126 = vector.shape_cast %123 : vector<2x32xbf16> to vector<1x2x32xbf16>
    tpu.vector_store %arg5[%c6_63, %c0_64, %c0_65], %126 {strides = array<i32>} : memref<8x2x32xbf16, #tpu.memory_space<vmem>>, vector<1x2x32xbf16>,
    %c2 = arith.constant 2 : index
    %c0_66 = arith.constant 0 : index
    %c0_67 = arith.constant 0 : index
    %127 = vector.load %arg1[%c2, %c0_66, %c0_67] : memref<8x2x128xbf16, #tpu.memory_space<vmem>>, vector<1x2x128xbf16>
    %128 = vector.shape_cast %127 : vector<1x2x128xbf16> to vector<2x128xbf16>
    %129 = arith.extf %128 : vector<2x128xbf16> to vector<2x128xf32>
    %c0_68 = arith.constant 0 : index
    %c0_69 = arith.constant 0 : index
    %130 = vector.load %arg8[%c0_68, %c0_69] : memref<2x32xf32, #tpu.memory_space<vmem>>, vector<2x32xf32>
    %131 = arith.truncf %130 : vector<2x32xf32> to vector<2x32xbf16>
    %cst_70 = arith.constant dense<0.000000e+00> : vector<2x128xf32>
    %132 = tpu.matmul %131, %4, %cst_70 {dimension_numbers = #tpu.dot_dimension_numbers<[1], [0], [0], [1], [0, 0, 1, 1], [], []>} : vector<2x32xbf16>, vector<32x128xbf16>, vector<2x128xf32> -> vector<2x128xf32>
    %133 = arith.addf %129, %132 : vector<2x128xf32>
    %c5 = arith.constant 5 : index
    %c0_71 = arith.constant 0 : index
    %c0_72 = arith.constant 0 : index
    %134 = vector.load %arg2[%c5, %c0_71, %c0_72] : memref<8x2x128xbf16, #tpu.memory_space<vmem>>, vector<1x2x128xbf16>
    %135 = vector.shape_cast %134 : vector<1x2x128xbf16> to vector<2x128xbf16>
    %136 = arith.extf %135 : vector<2x128xbf16> to vector<2x128xf32>
    %c0_73 = arith.constant 0 : index
    %c0_74 = arith.constant 0 : index
    %137 = vector.load %arg9[%c0_73, %c0_74] : memref<2x32xf32, #tpu.memory_space<vmem>>, vector<2x32xf32>
    %138 = arith.truncf %137 : vector<2x32xf32> to vector<2x32xbf16>
    %cst_75 = arith.constant dense<0.000000e+00> : vector<2x128xf32>
    %139 = tpu.matmul %138, %6, %cst_75 {dimension_numbers = #tpu.dot_dimension_numbers<[1], [0], [0], [1], [0, 0, 1, 1], [], []>} : vector<2x32xbf16>, vector<32x128xbf16>, vector<2x128xf32> -> vector<2x128xf32>
    %140 = arith.addf %136, %139 : vector<2x128xf32>
    %141 = vector.extract_strided_slice %133 {offsets = [0, 0], sizes = [2, 96], strides = [1, 1]} : vector<2x128xf32> to vector<2x96xf32>
    %142 = arith.negf %141 : vector<2x96xf32>
    %143 = math.exp %142 : vector<2x96xf32>
    %cst_76 = arith.constant 1.000000e+00 : f32
    %144 = vector.broadcast %cst_76 : f32 to vector<2x96xf32>
    %145 = arith.addf %144, %143 : vector<2x96xf32>
    %146 = arith.divf %144, %145 : vector<2x96xf32>
    %147 = vector.extract_strided_slice %133 {offsets = [0, 96], sizes = [2, 32], strides = [1, 1]} : vector<2x128xf32> to vector<2x32xf32>
    %148 = math.tanh %147 : vector<2x32xf32>
    %149 = vector.extract_strided_slice %146 {offsets = [0, 0], sizes = [2, 32], strides = [1, 1]} : vector<2x96xf32> to vector<2x32xf32>
    %150 = vector.extract_strided_slice %146 {offsets = [0, 32], sizes = [2, 32], strides = [1, 1]} : vector<2x96xf32> to vector<2x32xf32>
    %151 = vector.extract_strided_slice %146 {offsets = [0, 64], sizes = [2, 32], strides = [1, 1]} : vector<2x96xf32> to vector<2x32xf32>
    %c0_77 = arith.constant 0 : index
    %c0_78 = arith.constant 0 : index
    %152 = vector.load %arg10[%c0_77, %c0_78] : memref<2x32xf32, #tpu.memory_space<vmem>>, vector<2x32xf32>
    %153 = arith.mulf %150, %152 : vector<2x32xf32>
    %154 = arith.mulf %149, %148 : vector<2x32xf32>
    %155 = arith.addf %153, %154 : vector<2x32xf32>
    %156 = math.tanh %155 : vector<2x32xf32>
    %157 = arith.mulf %151, %156 : vector<2x32xf32>
    %c0_79 = arith.constant 0 : index
    %c0_80 = arith.constant 0 : index
    %158 = vector.load %arg8[%c0_79, %c0_80] : memref<2x32xf32, #tpu.memory_space<vmem>>, vector<2x32xf32>
    tpu.vector_store %arg8[%c0_79, %c0_80], %157 {strides = array<i32>} : memref<2x32xf32, #tpu.memory_space<vmem>>, vector<2x32xf32>,
    %c0_81 = arith.constant 0 : index
    %c0_82 = arith.constant 0 : index
    %159 = vector.load %arg10[%c0_81, %c0_82] : memref<2x32xf32, #tpu.memory_space<vmem>>, vector<2x32xf32>
    tpu.vector_store %arg10[%c0_81, %c0_82], %155 {strides = array<i32>} : memref<2x32xf32, #tpu.memory_space<vmem>>, vector<2x32xf32>,
    %160 = arith.truncf %157 : vector<2x32xf32> to vector<2x32xbf16>
    %c2_83 = arith.constant 2 : index
    %c0_84 = arith.constant 0 : index
    %c0_85 = arith.constant 0 : index
    %161 = vector.load %arg4[%c2_83, %c0_84, %c0_85] : memref<8x2x32xbf16, #tpu.memory_space<vmem>>, vector<1x2x32xbf16>
    %162 = vector.shape_cast %161 : vector<1x2x32xbf16> to vector<2x32xbf16>
    %163 = vector.shape_cast %160 : vector<2x32xbf16> to vector<1x2x32xbf16>
    tpu.vector_store %arg4[%c2_83, %c0_84, %c0_85], %163 {strides = array<i32>} : memref<8x2x32xbf16, #tpu.memory_space<vmem>>, vector<1x2x32xbf16>,
    %164 = vector.extract_strided_slice %140 {offsets = [0, 0], sizes = [2, 96], strides = [1, 1]} : vector<2x128xf32> to vector<2x96xf32>
    %165 = arith.negf %164 : vector<2x96xf32>
    %166 = math.exp %165 : vector<2x96xf32>
    %cst_86 = arith.constant 1.000000e+00 : f32
    %167 = vector.broadcast %cst_86 : f32 to vector<2x96xf32>
    %168 = arith.addf %167, %166 : vector<2x96xf32>
    %169 = arith.divf %167, %168 : vector<2x96xf32>
    %170 = vector.extract_strided_slice %140 {offsets = [0, 96], sizes = [2, 32], strides = [1, 1]} : vector<2x128xf32> to vector<2x32xf32>
    %171 = math.tanh %170 : vector<2x32xf32>
    %172 = vector.extract_strided_slice %169 {offsets = [0, 0], sizes = [2, 32], strides = [1, 1]} : vector<2x96xf32> to vector<2x32xf32>
    %173 = vector.extract_strided_slice %169 {offsets = [0, 32], sizes = [2, 32], strides = [1, 1]} : vector<2x96xf32> to vector<2x32xf32>
    %174 = vector.extract_strided_slice %169 {offsets = [0, 64], sizes = [2, 32], strides = [1, 1]} : vector<2x96xf32> to vector<2x32xf32>
    %c0_87 = arith.constant 0 : index
    %c0_88 = arith.constant 0 : index
    %175 = vector.load %arg11[%c0_87, %c0_88] : memref<2x32xf32, #tpu.memory_space<vmem>>, vector<2x32xf32>
    %176 = arith.mulf %173, %175 : vector<2x32xf32>
    %177 = arith.mulf %172, %171 : vector<2x32xf32>
    %178 = arith.addf %176, %177 : vector<2x32xf32>
    %179 = math.tanh %178 : vector<2x32xf32>
    %180 = arith.mulf %174, %179 : vector<2x32xf32>
    %c0_89 = arith.constant 0 : index
    %c0_90 = arith.constant 0 : index
    %181 = vector.load %arg9[%c0_89, %c0_90] : memref<2x32xf32, #tpu.memory_space<vmem>>, vector<2x32xf32>
    tpu.vector_store %arg9[%c0_89, %c0_90], %180 {strides = array<i32>} : memref<2x32xf32, #tpu.memory_space<vmem>>, vector<2x32xf32>,
    %c0_91 = arith.constant 0 : index
    %c0_92 = arith.constant 0 : index
    %182 = vector.load %arg11[%c0_91, %c0_92] : memref<2x32xf32, #tpu.memory_space<vmem>>, vector<2x32xf32>
    tpu.vector_store %arg11[%c0_91, %c0_92], %178 {strides = array<i32>} : memref<2x32xf32, #tpu.memory_space<vmem>>, vector<2x32xf32>,
    %183 = arith.truncf %180 : vector<2x32xf32> to vector<2x32xbf16>
    %c5_93 = arith.constant 5 : index
    %c0_94 = arith.constant 0 : index
    %c0_95 = arith.constant 0 : index
    %184 = vector.load %arg5[%c5_93, %c0_94, %c0_95] : memref<8x2x32xbf16, #tpu.memory_space<vmem>>, vector<1x2x32xbf16>
    %185 = vector.shape_cast %184 : vector<1x2x32xbf16> to vector<2x32xbf16>
    %186 = vector.shape_cast %183 : vector<2x32xbf16> to vector<1x2x32xbf16>
    tpu.vector_store %arg5[%c5_93, %c0_94, %c0_95], %186 {strides = array<i32>} : memref<8x2x32xbf16, #tpu.memory_space<vmem>>, vector<1x2x32xbf16>,
    %c3 = arith.constant 3 : index
    %c0_96 = arith.constant 0 : index
    %c0_97 = arith.constant 0 : index
    %187 = vector.load %arg1[%c3, %c0_96, %c0_97] : memref<8x2x128xbf16, #tpu.memory_space<vmem>>, vector<1x2x128xbf16>
    %188 = vector.shape_cast %187 : vector<1x2x128xbf16> to vector<2x128xbf16>
    %189 = arith.extf %188 : vector<2x128xbf16> to vector<2x128xf32>
    %c0_98 = arith.constant 0 : index
    %c0_99 = arith.constant 0 : index
    %190 = vector.load %arg8[%c0_98, %c0_99] : memref<2x32xf32, #tpu.memory_space<vmem>>, vector<2x32xf32>
    %191 = arith.truncf %190 : vector<2x32xf32> to vector<2x32xbf16>
    %cst_100 = arith.constant dense<0.000000e+00> : vector<2x128xf32>
    %192 = tpu.matmul %191, %4, %cst_100 {dimension_numbers = #tpu.dot_dimension_numbers<[1], [0], [0], [1], [0, 0, 1, 1], [], []>} : vector<2x32xbf16>, vector<32x128xbf16>, vector<2x128xf32> -> vector<2x128xf32>
    %193 = arith.addf %189, %192 : vector<2x128xf32>
    %c4 = arith.constant 4 : index
    %c0_101 = arith.constant 0 : index
    %c0_102 = arith.constant 0 : index
    %194 = vector.load %arg2[%c4, %c0_101, %c0_102] : memref<8x2x128xbf16, #tpu.memory_space<vmem>>, vector<1x2x128xbf16>
    %195 = vector.shape_cast %194 : vector<1x2x128xbf16> to vector<2x128xbf16>
    %196 = arith.extf %195 : vector<2x128xbf16> to vector<2x128xf32>
    %c0_103 = arith.constant 0 : index
    %c0_104 = arith.constant 0 : index
    %197 = vector.load %arg9[%c0_103, %c0_104] : memref<2x32xf32, #tpu.memory_space<vmem>>, vector<2x32xf32>
    %198 = arith.truncf %197 : vector<2x32xf32> to vector<2x32xbf16>
    %cst_105 = arith.constant dense<0.000000e+00> : vector<2x128xf32>
    %199 = tpu.matmul %198, %6, %cst_105 {dimension_numbers = #tpu.dot_dimension_numbers<[1], [0], [0], [1], [0, 0, 1, 1], [], []>} : vector<2x32xbf16>, vector<32x128xbf16>, vector<2x128xf32> -> vector<2x128xf32>
    %200 = arith.addf %196, %199 : vector<2x128xf32>
    %201 = vector.extract_strided_slice %193 {offsets = [0, 0], sizes = [2, 96], strides = [1, 1]} : vector<2x128xf32> to vector<2x96xf32>
    %202 = arith.negf %201 : vector<2x96xf32>
    %203 = math.exp %202 : vector<2x96xf32>
    %cst_106 = arith.constant 1.000000e+00 : f32
    %204 = vector.broadcast %cst_106 : f32 to vector<2x96xf32>
    %205 = arith.addf %204, %203 : vector<2x96xf32>
    %206 = arith.divf %204, %205 : vector<2x96xf32>
    %207 = vector.extract_strided_slice %193 {offsets = [0, 96], sizes = [2, 32], strides = [1, 1]} : vector<2x128xf32> to vector<2x32xf32>
    %208 = math.tanh %207 : vector<2x32xf32>
    %209 = vector.extract_strided_slice %206 {offsets = [0, 0], sizes = [2, 32], strides = [1, 1]} : vector<2x96xf32> to vector<2x32xf32>
    %210 = vector.extract_strided_slice %206 {offsets = [0, 32], sizes = [2, 32], strides = [1, 1]} : vector<2x96xf32> to vector<2x32xf32>
    %211 = vector.extract_strided_slice %206 {offsets = [0, 64], sizes = [2, 32], strides = [1, 1]} : vector<2x96xf32> to vector<2x32xf32>
    %c0_107 = arith.constant 0 : index
    %c0_108 = arith.constant 0 : index
    %212 = vector.load %arg10[%c0_107, %c0_108] : memref<2x32xf32, #tpu.memory_space<vmem>>, vector<2x32xf32>
    %213 = arith.mulf %210, %212 : vector<2x32xf32>
    %214 = arith.mulf %209, %208 : vector<2x32xf32>
    %215 = arith.addf %213, %214 : vector<2x32xf32>
    %216 = math.tanh %215 : vector<2x32xf32>
    %217 = arith.mulf %211, %216 : vector<2x32xf32>
    %c0_109 = arith.constant 0 : index
    %c0_110 = arith.constant 0 : index
    %218 = vector.load %arg8[%c0_109, %c0_110] : memref<2x32xf32, #tpu.memory_space<vmem>>, vector<2x32xf32>
    tpu.vector_store %arg8[%c0_109, %c0_110], %217 {strides = array<i32>} : memref<2x32xf32, #tpu.memory_space<vmem>>, vector<2x32xf32>,
    %c0_111 = arith.constant 0 : index
    %c0_112 = arith.constant 0 : index
    %219 = vector.load %arg10[%c0_111, %c0_112] : memref<2x32xf32, #tpu.memory_space<vmem>>, vector<2x32xf32>
    tpu.vector_store %arg10[%c0_111, %c0_112], %215 {strides = array<i32>} : memref<2x32xf32, #tpu.memory_space<vmem>>, vector<2x32xf32>,
    %220 = arith.truncf %217 : vector<2x32xf32> to vector<2x32xbf16>
    %c3_113 = arith.constant 3 : index
    %c0_114 = arith.constant 0 : index
    %c0_115 = arith.constant 0 : index
    %221 = vector.load %arg4[%c3_113, %c0_114, %c0_115] : memref<8x2x32xbf16, #tpu.memory_space<vmem>>, vector<1x2x32xbf16>
    %222 = vector.shape_cast %221 : vector<1x2x32xbf16> to vector<2x32xbf16>
    %223 = vector.shape_cast %220 : vector<2x32xbf16> to vector<1x2x32xbf16>
    tpu.vector_store %arg4[%c3_113, %c0_114, %c0_115], %223 {strides = array<i32>} : memref<8x2x32xbf16, #tpu.memory_space<vmem>>, vector<1x2x32xbf16>,
    %224 = vector.extract_strided_slice %200 {offsets = [0, 0], sizes = [2, 96], strides = [1, 1]} : vector<2x128xf32> to vector<2x96xf32>
    %225 = arith.negf %224 : vector<2x96xf32>
    %226 = math.exp %225 : vector<2x96xf32>
    %cst_116 = arith.constant 1.000000e+00 : f32
    %227 = vector.broadcast %cst_116 : f32 to vector<2x96xf32>
    %228 = arith.addf %227, %226 : vector<2x96xf32>
    %229 = arith.divf %227, %228 : vector<2x96xf32>
    %230 = vector.extract_strided_slice %200 {offsets = [0, 96], sizes = [2, 32], strides = [1, 1]} : vector<2x128xf32> to vector<2x32xf32>
    %231 = math.tanh %230 : vector<2x32xf32>
    %232 = vector.extract_strided_slice %229 {offsets = [0, 0], sizes = [2, 32], strides = [1, 1]} : vector<2x96xf32> to vector<2x32xf32>
    %233 = vector.extract_strided_slice %229 {offsets = [0, 32], sizes = [2, 32], strides = [1, 1]} : vector<2x96xf32> to vector<2x32xf32>
    %234 = vector.extract_strided_slice %229 {offsets = [0, 64], sizes = [2, 32], strides = [1, 1]} : vector<2x96xf32> to vector<2x32xf32>
    %c0_117 = arith.constant 0 : index
    %c0_118 = arith.constant 0 : index
    %235 = vector.load %arg11[%c0_117, %c0_118] : memref<2x32xf32, #tpu.memory_space<vmem>>, vector<2x32xf32>
    %236 = arith.mulf %233, %235 : vector<2x32xf32>
    %237 = arith.mulf %232, %231 : vector<2x32xf32>
    %238 = arith.addf %236, %237 : vector<2x32xf32>
    %239 = math.tanh %238 : vector<2x32xf32>
    %240 = arith.mulf %234, %239 : vector<2x32xf32>
    %c0_119 = arith.constant 0 : index
    %c0_120 = arith.constant 0 : index
    %241 = vector.load %arg9[%c0_119, %c0_120] : memref<2x32xf32, #tpu.memory_space<vmem>>, vector<2x32xf32>
    tpu.vector_store %arg9[%c0_119, %c0_120], %240 {strides = array<i32>} : memref<2x32xf32, #tpu.memory_space<vmem>>, vector<2x32xf32>,
    %c0_121 = arith.constant 0 : index
    %c0_122 = arith.constant 0 : index
    %242 = vector.load %arg11[%c0_121, %c0_122] : memref<2x32xf32, #tpu.memory_space<vmem>>, vector<2x32xf32>
    tpu.vector_store %arg11[%c0_121, %c0_122], %238 {strides = array<i32>} : memref<2x32xf32, #tpu.memory_space<vmem>>, vector<2x32xf32>,
    %243 = arith.truncf %240 : vector<2x32xf32> to vector<2x32xbf16>
    %c4_123 = arith.constant 4 : index
    %c0_124 = arith.constant 0 : index
    %c0_125 = arith.constant 0 : index
    %244 = vector.load %arg5[%c4_123, %c0_124, %c0_125] : memref<8x2x32xbf16, #tpu.memory_space<vmem>>, vector<1x2x32xbf16>
    %245 = vector.shape_cast %244 : vector<1x2x32xbf16> to vector<2x32xbf16>
    %246 = vector.shape_cast %243 : vector<2x32xbf16> to vector<1x2x32xbf16>
    tpu.vector_store %arg5[%c4_123, %c0_124, %c0_125], %246 {strides = array<i32>} : memref<8x2x32xbf16, #tpu.memory_space<vmem>>, vector<1x2x32xbf16>,
    %c4_126 = arith.constant 4 : index
    %c0_127 = arith.constant 0 : index
    %c0_128 = arith.constant 0 : index
    %247 = vector.load %arg1[%c4_126, %c0_127, %c0_128] : memref<8x2x128xbf16, #tpu.memory_space<vmem>>, vector<1x2x128xbf16>
    %248 = vector.shape_cast %247 : vector<1x2x128xbf16> to vector<2x128xbf16>
    %249 = arith.extf %248 : vector<2x128xbf16> to vector<2x128xf32>
    %c0_129 = arith.constant 0 : index
    %c0_130 = arith.constant 0 : index
    %250 = vector.load %arg8[%c0_129, %c0_130] : memref<2x32xf32, #tpu.memory_space<vmem>>, vector<2x32xf32>
    %251 = arith.truncf %250 : vector<2x32xf32> to vector<2x32xbf16>
    %cst_131 = arith.constant dense<0.000000e+00> : vector<2x128xf32>
    %252 = tpu.matmul %251, %4, %cst_131 {dimension_numbers = #tpu.dot_dimension_numbers<[1], [0], [0], [1], [0, 0, 1, 1], [], []>} : vector<2x32xbf16>, vector<32x128xbf16>, vector<2x128xf32> -> vector<2x128xf32>
    %253 = arith.addf %249, %252 : vector<2x128xf32>
    %c3_132 = arith.constant 3 : index
    %c0_133 = arith.constant 0 : index
    %c0_134 = arith.constant 0 : index
    %254 = vector.load %arg2[%c3_132, %c0_133, %c0_134] : memref<8x2x128xbf16, #tpu.memory_space<vmem>>, vector<1x2x128xbf16>
    %255 = vector.shape_cast %254 : vector<1x2x128xbf16> to vector<2x128xbf16>
    %256 = arith.extf %255 : vector<2x128xbf16> to vector<2x128xf32>
    %c0_135 = arith.constant 0 : index
    %c0_136 = arith.constant 0 : index
    %257 = vector.load %arg9[%c0_135, %c0_136] : memref<2x32xf32, #tpu.memory_space<vmem>>, vector<2x32xf32>
    %258 = arith.truncf %257 : vector<2x32xf32> to vector<2x32xbf16>
    %cst_137 = arith.constant dense<0.000000e+00> : vector<2x128xf32>
    %259 = tpu.matmul %258, %6, %cst_137 {dimension_numbers = #tpu.dot_dimension_numbers<[1], [0], [0], [1], [0, 0, 1, 1], [], []>} : vector<2x32xbf16>, vector<32x128xbf16>, vector<2x128xf32> -> vector<2x128xf32>
    %260 = arith.addf %256, %259 : vector<2x128xf32>
    %261 = vector.extract_strided_slice %253 {offsets = [0, 0], sizes = [2, 96], strides = [1, 1]} : vector<2x128xf32> to vector<2x96xf32>
    %262 = arith.negf %261 : vector<2x96xf32>
    %263 = math.exp %262 : vector<2x96xf32>
    %cst_138 = arith.constant 1.000000e+00 : f32
    %264 = vector.broadcast %cst_138 : f32 to vector<2x96xf32>
    %265 = arith.addf %264, %263 : vector<2x96xf32>
    %266 = arith.divf %264, %265 : vector<2x96xf32>
    %267 = vector.extract_strided_slice %253 {offsets = [0, 96], sizes = [2, 32], strides = [1, 1]} : vector<2x128xf32> to vector<2x32xf32>
    %268 = math.tanh %267 : vector<2x32xf32>
    %269 = vector.extract_strided_slice %266 {offsets = [0, 0], sizes = [2, 32], strides = [1, 1]} : vector<2x96xf32> to vector<2x32xf32>
    %270 = vector.extract_strided_slice %266 {offsets = [0, 32], sizes = [2, 32], strides = [1, 1]} : vector<2x96xf32> to vector<2x32xf32>
    %271 = vector.extract_strided_slice %266 {offsets = [0, 64], sizes = [2, 32], strides = [1, 1]} : vector<2x96xf32> to vector<2x32xf32>
    %c0_139 = arith.constant 0 : index
    %c0_140 = arith.constant 0 : index
    %272 = vector.load %arg10[%c0_139, %c0_140] : memref<2x32xf32, #tpu.memory_space<vmem>>, vector<2x32xf32>
    %273 = arith.mulf %270, %272 : vector<2x32xf32>
    %274 = arith.mulf %269, %268 : vector<2x32xf32>
    %275 = arith.addf %273, %274 : vector<2x32xf32>
    %276 = math.tanh %275 : vector<2x32xf32>
    %277 = arith.mulf %271, %276 : vector<2x32xf32>
    %c0_141 = arith.constant 0 : index
    %c0_142 = arith.constant 0 : index
    %278 = vector.load %arg8[%c0_141, %c0_142] : memref<2x32xf32, #tpu.memory_space<vmem>>, vector<2x32xf32>
    tpu.vector_store %arg8[%c0_141, %c0_142], %277 {strides = array<i32>} : memref<2x32xf32, #tpu.memory_space<vmem>>, vector<2x32xf32>,
    %c0_143 = arith.constant 0 : index
    %c0_144 = arith.constant 0 : index
    %279 = vector.load %arg10[%c0_143, %c0_144] : memref<2x32xf32, #tpu.memory_space<vmem>>, vector<2x32xf32>
    tpu.vector_store %arg10[%c0_143, %c0_144], %275 {strides = array<i32>} : memref<2x32xf32, #tpu.memory_space<vmem>>, vector<2x32xf32>,
    %280 = arith.truncf %277 : vector<2x32xf32> to vector<2x32xbf16>
    %c4_145 = arith.constant 4 : index
    %c0_146 = arith.constant 0 : index
    %c0_147 = arith.constant 0 : index
    %281 = vector.load %arg4[%c4_145, %c0_146, %c0_147] : memref<8x2x32xbf16, #tpu.memory_space<vmem>>, vector<1x2x32xbf16>
    %282 = vector.shape_cast %281 : vector<1x2x32xbf16> to vector<2x32xbf16>
    %283 = vector.shape_cast %280 : vector<2x32xbf16> to vector<1x2x32xbf16>
    tpu.vector_store %arg4[%c4_145, %c0_146, %c0_147], %283 {strides = array<i32>} : memref<8x2x32xbf16, #tpu.memory_space<vmem>>, vector<1x2x32xbf16>,
    %284 = vector.extract_strided_slice %260 {offsets = [0, 0], sizes = [2, 96], strides = [1, 1]} : vector<2x128xf32> to vector<2x96xf32>
    %285 = arith.negf %284 : vector<2x96xf32>
    %286 = math.exp %285 : vector<2x96xf32>
    %cst_148 = arith.constant 1.000000e+00 : f32
    %287 = vector.broadcast %cst_148 : f32 to vector<2x96xf32>
    %288 = arith.addf %287, %286 : vector<2x96xf32>
    %289 = arith.divf %287, %288 : vector<2x96xf32>
    %290 = vector.extract_strided_slice %260 {offsets = [0, 96], sizes = [2, 32], strides = [1, 1]} : vector<2x128xf32> to vector<2x32xf32>
    %291 = math.tanh %290 : vector<2x32xf32>
    %292 = vector.extract_strided_slice %289 {offsets = [0, 0], sizes = [2, 32], strides = [1, 1]} : vector<2x96xf32> to vector<2x32xf32>
    %293 = vector.extract_strided_slice %289 {offsets = [0, 32], sizes = [2, 32], strides = [1, 1]} : vector<2x96xf32> to vector<2x32xf32>
    %294 = vector.extract_strided_slice %289 {offsets = [0, 64], sizes = [2, 32], strides = [1, 1]} : vector<2x96xf32> to vector<2x32xf32>
    %c0_149 = arith.constant 0 : index
    %c0_150 = arith.constant 0 : index
    %295 = vector.load %arg11[%c0_149, %c0_150] : memref<2x32xf32, #tpu.memory_space<vmem>>, vector<2x32xf32>
    %296 = arith.mulf %293, %295 : vector<2x32xf32>
    %297 = arith.mulf %292, %291 : vector<2x32xf32>
    %298 = arith.addf %296, %297 : vector<2x32xf32>
    %299 = math.tanh %298 : vector<2x32xf32>
    %300 = arith.mulf %294, %299 : vector<2x32xf32>
    %c0_151 = arith.constant 0 : index
    %c0_152 = arith.constant 0 : index
    %301 = vector.load %arg9[%c0_151, %c0_152] : memref<2x32xf32, #tpu.memory_space<vmem>>, vector<2x32xf32>
    tpu.vector_store %arg9[%c0_151, %c0_152], %300 {strides = array<i32>} : memref<2x32xf32, #tpu.memory_space<vmem>>, vector<2x32xf32>,
    %c0_153 = arith.constant 0 : index
    %c0_154 = arith.constant 0 : index
    %302 = vector.load %arg11[%c0_153, %c0_154] : memref<2x32xf32, #tpu.memory_space<vmem>>, vector<2x32xf32>
    tpu.vector_store %arg11[%c0_153, %c0_154], %298 {strides = array<i32>} : memref<2x32xf32, #tpu.memory_space<vmem>>, vector<2x32xf32>,
    %303 = arith.truncf %300 : vector<2x32xf32> to vector<2x32xbf16>
    %c3_155 = arith.constant 3 : index
    %c0_156 = arith.constant 0 : index
    %c0_157 = arith.constant 0 : index
    %304 = vector.load %arg5[%c3_155, %c0_156, %c0_157] : memref<8x2x32xbf16, #tpu.memory_space<vmem>>, vector<1x2x32xbf16>
    %305 = vector.shape_cast %304 : vector<1x2x32xbf16> to vector<2x32xbf16>
    %306 = vector.shape_cast %303 : vector<2x32xbf16> to vector<1x2x32xbf16>
    tpu.vector_store %arg5[%c3_155, %c0_156, %c0_157], %306 {strides = array<i32>} : memref<8x2x32xbf16, #tpu.memory_space<vmem>>, vector<1x2x32xbf16>,
    %c5_158 = arith.constant 5 : index
    %c0_159 = arith.constant 0 : index
    %c0_160 = arith.constant 0 : index
    %307 = vector.load %arg1[%c5_158, %c0_159, %c0_160] : memref<8x2x128xbf16, #tpu.memory_space<vmem>>, vector<1x2x128xbf16>
    %308 = vector.shape_cast %307 : vector<1x2x128xbf16> to vector<2x128xbf16>
    %309 = arith.extf %308 : vector<2x128xbf16> to vector<2x128xf32>
    %c0_161 = arith.constant 0 : index
    %c0_162 = arith.constant 0 : index
    %310 = vector.load %arg8[%c0_161, %c0_162] : memref<2x32xf32, #tpu.memory_space<vmem>>, vector<2x32xf32>
    %311 = arith.truncf %310 : vector<2x32xf32> to vector<2x32xbf16>
    %cst_163 = arith.constant dense<0.000000e+00> : vector<2x128xf32>
    %312 = tpu.matmul %311, %4, %cst_163 {dimension_numbers = #tpu.dot_dimension_numbers<[1], [0], [0], [1], [0, 0, 1, 1], [], []>} : vector<2x32xbf16>, vector<32x128xbf16>, vector<2x128xf32> -> vector<2x128xf32>
    %313 = arith.addf %309, %312 : vector<2x128xf32>
    %c2_164 = arith.constant 2 : index
    %c0_165 = arith.constant 0 : index
    %c0_166 = arith.constant 0 : index
    %314 = vector.load %arg2[%c2_164, %c0_165, %c0_166] : memref<8x2x128xbf16, #tpu.memory_space<vmem>>, vector<1x2x128xbf16>
    %315 = vector.shape_cast %314 : vector<1x2x128xbf16> to vector<2x128xbf16>
    %316 = arith.extf %315 : vector<2x128xbf16> to vector<2x128xf32>
    %c0_167 = arith.constant 0 : index
    %c0_168 = arith.constant 0 : index
    %317 = vector.load %arg9[%c0_167, %c0_168] : memref<2x32xf32, #tpu.memory_space<vmem>>, vector<2x32xf32>
    %318 = arith.truncf %317 : vector<2x32xf32> to vector<2x32xbf16>
    %cst_169 = arith.constant dense<0.000000e+00> : vector<2x128xf32>
    %319 = tpu.matmul %318, %6, %cst_169 {dimension_numbers = #tpu.dot_dimension_numbers<[1], [0], [0], [1], [0, 0, 1, 1], [], []>} : vector<2x32xbf16>, vector<32x128xbf16>, vector<2x128xf32> -> vector<2x128xf32>
    %320 = arith.addf %316, %319 : vector<2x128xf32>
    %321 = vector.extract_strided_slice %313 {offsets = [0, 0], sizes = [2, 96], strides = [1, 1]} : vector<2x128xf32> to vector<2x96xf32>
    %322 = arith.negf %321 : vector<2x96xf32>
    %323 = math.exp %322 : vector<2x96xf32>
    %cst_170 = arith.constant 1.000000e+00 : f32
    %324 = vector.broadcast %cst_170 : f32 to vector<2x96xf32>
    %325 = arith.addf %324, %323 : vector<2x96xf32>
    %326 = arith.divf %324, %325 : vector<2x96xf32>
    %327 = vector.extract_strided_slice %313 {offsets = [0, 96], sizes = [2, 32], strides = [1, 1]} : vector<2x128xf32> to vector<2x32xf32>
    %328 = math.tanh %327 : vector<2x32xf32>
    %329 = vector.extract_strided_slice %326 {offsets = [0, 0], sizes = [2, 32], strides = [1, 1]} : vector<2x96xf32> to vector<2x32xf32>
    %330 = vector.extract_strided_slice %326 {offsets = [0, 32], sizes = [2, 32], strides = [1, 1]} : vector<2x96xf32> to vector<2x32xf32>
    %331 = vector.extract_strided_slice %326 {offsets = [0, 64], sizes = [2, 32], strides = [1, 1]} : vector<2x96xf32> to vector<2x32xf32>
    %c0_171 = arith.constant 0 : index
    %c0_172 = arith.constant 0 : index
    %332 = vector.load %arg10[%c0_171, %c0_172] : memref<2x32xf32, #tpu.memory_space<vmem>>, vector<2x32xf32>
    %333 = arith.mulf %330, %332 : vector<2x32xf32>
    %334 = arith.mulf %329, %328 : vector<2x32xf32>
    %335 = arith.addf %333, %334 : vector<2x32xf32>
    %336 = math.tanh %335 : vector<2x32xf32>
    %337 = arith.mulf %331, %336 : vector<2x32xf32>
    %c0_173 = arith.constant 0 : index
    %c0_174 = arith.constant 0 : index
    %338 = vector.load %arg8[%c0_173, %c0_174] : memref<2x32xf32, #tpu.memory_space<vmem>>, vector<2x32xf32>
    tpu.vector_store %arg8[%c0_173, %c0_174], %337 {strides = array<i32>} : memref<2x32xf32, #tpu.memory_space<vmem>>, vector<2x32xf32>,
    %c0_175 = arith.constant 0 : index
    %c0_176 = arith.constant 0 : index
    %339 = vector.load %arg10[%c0_175, %c0_176] : memref<2x32xf32, #tpu.memory_space<vmem>>, vector<2x32xf32>
    tpu.vector_store %arg10[%c0_175, %c0_176], %335 {strides = array<i32>} : memref<2x32xf32, #tpu.memory_space<vmem>>, vector<2x32xf32>,
    %340 = arith.truncf %337 : vector<2x32xf32> to vector<2x32xbf16>
    %c5_177 = arith.constant 5 : index
    %c0_178 = arith.constant 0 : index
    %c0_179 = arith.constant 0 : index
    %341 = vector.load %arg4[%c5_177, %c0_178, %c0_179] : memref<8x2x32xbf16, #tpu.memory_space<vmem>>, vector<1x2x32xbf16>
    %342 = vector.shape_cast %341 : vector<1x2x32xbf16> to vector<2x32xbf16>
    %343 = vector.shape_cast %340 : vector<2x32xbf16> to vector<1x2x32xbf16>
    tpu.vector_store %arg4[%c5_177, %c0_178, %c0_179], %343 {strides = array<i32>} : memref<8x2x32xbf16, #tpu.memory_space<vmem>>, vector<1x2x32xbf16>,
    %344 = vector.extract_strided_slice %320 {offsets = [0, 0], sizes = [2, 96], strides = [1, 1]} : vector<2x128xf32> to vector<2x96xf32>
    %345 = arith.negf %344 : vector<2x96xf32>
    %346 = math.exp %345 : vector<2x96xf32>
    %cst_180 = arith.constant 1.000000e+00 : f32
    %347 = vector.broadcast %cst_180 : f32 to vector<2x96xf32>
    %348 = arith.addf %347, %346 : vector<2x96xf32>
    %349 = arith.divf %347, %348 : vector<2x96xf32>
    %350 = vector.extract_strided_slice %320 {offsets = [0, 96], sizes = [2, 32], strides = [1, 1]} : vector<2x128xf32> to vector<2x32xf32>
    %351 = math.tanh %350 : vector<2x32xf32>
    %352 = vector.extract_strided_slice %349 {offsets = [0, 0], sizes = [2, 32], strides = [1, 1]} : vector<2x96xf32> to vector<2x32xf32>
    %353 = vector.extract_strided_slice %349 {offsets = [0, 32], sizes = [2, 32], strides = [1, 1]} : vector<2x96xf32> to vector<2x32xf32>
    %354 = vector.extract_strided_slice %349 {offsets = [0, 64], sizes = [2, 32], strides = [1, 1]} : vector<2x96xf32> to vector<2x32xf32>
    %c0_181 = arith.constant 0 : index
    %c0_182 = arith.constant 0 : index
    %355 = vector.load %arg11[%c0_181, %c0_182] : memref<2x32xf32, #tpu.memory_space<vmem>>, vector<2x32xf32>
    %356 = arith.mulf %353, %355 : vector<2x32xf32>
    %357 = arith.mulf %352, %351 : vector<2x32xf32>
    %358 = arith.addf %356, %357 : vector<2x32xf32>
    %359 = math.tanh %358 : vector<2x32xf32>
    %360 = arith.mulf %354, %359 : vector<2x32xf32>
    %c0_183 = arith.constant 0 : index
    %c0_184 = arith.constant 0 : index
    %361 = vector.load %arg9[%c0_183, %c0_184] : memref<2x32xf32, #tpu.memory_space<vmem>>, vector<2x32xf32>
    tpu.vector_store %arg9[%c0_183, %c0_184], %360 {strides = array<i32>} : memref<2x32xf32, #tpu.memory_space<vmem>>, vector<2x32xf32>,
    %c0_185 = arith.constant 0 : index
    %c0_186 = arith.constant 0 : index
    %362 = vector.load %arg11[%c0_185, %c0_186] : memref<2x32xf32, #tpu.memory_space<vmem>>, vector<2x32xf32>
    tpu.vector_store %arg11[%c0_185, %c0_186], %358 {strides = array<i32>} : memref<2x32xf32, #tpu.memory_space<vmem>>, vector<2x32xf32>,
    %363 = arith.truncf %360 : vector<2x32xf32> to vector<2x32xbf16>
    %c2_187 = arith.constant 2 : index
    %c0_188 = arith.constant 0 : index
    %c0_189 = arith.constant 0 : index
    %364 = vector.load %arg5[%c2_187, %c0_188, %c0_189] : memref<8x2x32xbf16, #tpu.memory_space<vmem>>, vector<1x2x32xbf16>
    %365 = vector.shape_cast %364 : vector<1x2x32xbf16> to vector<2x32xbf16>
    %366 = vector.shape_cast %363 : vector<2x32xbf16> to vector<1x2x32xbf16>
    tpu.vector_store %arg5[%c2_187, %c0_188, %c0_189], %366 {strides = array<i32>} : memref<8x2x32xbf16, #tpu.memory_space<vmem>>, vector<1x2x32xbf16>,
    %c6_190 = arith.constant 6 : index
    %c0_191 = arith.constant 0 : index
    %c0_192 = arith.constant 0 : index
    %367 = vector.load %arg1[%c6_190, %c0_191, %c0_192] : memref<8x2x128xbf16, #tpu.memory_space<vmem>>, vector<1x2x128xbf16>
    %368 = vector.shape_cast %367 : vector<1x2x128xbf16> to vector<2x128xbf16>
    %369 = arith.extf %368 : vector<2x128xbf16> to vector<2x128xf32>
    %c0_193 = arith.constant 0 : index
    %c0_194 = arith.constant 0 : index
    %370 = vector.load %arg8[%c0_193, %c0_194] : memref<2x32xf32, #tpu.memory_space<vmem>>, vector<2x32xf32>
    %371 = arith.truncf %370 : vector<2x32xf32> to vector<2x32xbf16>
    %cst_195 = arith.constant dense<0.000000e+00> : vector<2x128xf32>
    %372 = tpu.matmul %371, %4, %cst_195 {dimension_numbers = #tpu.dot_dimension_numbers<[1], [0], [0], [1], [0, 0, 1, 1], [], []>} : vector<2x32xbf16>, vector<32x128xbf16>, vector<2x128xf32> -> vector<2x128xf32>
    %373 = arith.addf %369, %372 : vector<2x128xf32>
    %c1_196 = arith.constant 1 : index
    %c0_197 = arith.constant 0 : index
    %c0_198 = arith.constant 0 : index
    %374 = vector.load %arg2[%c1_196, %c0_197, %c0_198] : memref<8x2x128xbf16, #tpu.memory_space<vmem>>, vector<1x2x128xbf16>
    %375 = vector.shape_cast %374 : vector<1x2x128xbf16> to vector<2x128xbf16>
    %376 = arith.extf %375 : vector<2x128xbf16> to vector<2x128xf32>
    %c0_199 = arith.constant 0 : index
    %c0_200 = arith.constant 0 : index
    %377 = vector.load %arg9[%c0_199, %c0_200] : memref<2x32xf32, #tpu.memory_space<vmem>>, vector<2x32xf32>
    %378 = arith.truncf %377 : vector<2x32xf32> to vector<2x32xbf16>
    %cst_201 = arith.constant dense<0.000000e+00> : vector<2x128xf32>
    %379 = tpu.matmul %378, %6, %cst_201 {dimension_numbers = #tpu.dot_dimension_numbers<[1], [0], [0], [1], [0, 0, 1, 1], [], []>} : vector<2x32xbf16>, vector<32x128xbf16>, vector<2x128xf32> -> vector<2x128xf32>
    %380 = arith.addf %376, %379 : vector<2x128xf32>
    %381 = vector.extract_strided_slice %373 {offsets = [0, 0], sizes = [2, 96], strides = [1, 1]} : vector<2x128xf32> to vector<2x96xf32>
    %382 = arith.negf %381 : vector<2x96xf32>
    %383 = math.exp %382 : vector<2x96xf32>
    %cst_202 = arith.constant 1.000000e+00 : f32
    %384 = vector.broadcast %cst_202 : f32 to vector<2x96xf32>
    %385 = arith.addf %384, %383 : vector<2x96xf32>
    %386 = arith.divf %384, %385 : vector<2x96xf32>
    %387 = vector.extract_strided_slice %373 {offsets = [0, 96], sizes = [2, 32], strides = [1, 1]} : vector<2x128xf32> to vector<2x32xf32>
    %388 = math.tanh %387 : vector<2x32xf32>
    %389 = vector.extract_strided_slice %386 {offsets = [0, 0], sizes = [2, 32], strides = [1, 1]} : vector<2x96xf32> to vector<2x32xf32>
    %390 = vector.extract_strided_slice %386 {offsets = [0, 32], sizes = [2, 32], strides = [1, 1]} : vector<2x96xf32> to vector<2x32xf32>
    %391 = vector.extract_strided_slice %386 {offsets = [0, 64], sizes = [2, 32], strides = [1, 1]} : vector<2x96xf32> to vector<2x32xf32>
    %c0_203 = arith.constant 0 : index
    %c0_204 = arith.constant 0 : index
    %392 = vector.load %arg10[%c0_203, %c0_204] : memref<2x32xf32, #tpu.memory_space<vmem>>, vector<2x32xf32>
    %393 = arith.mulf %390, %392 : vector<2x32xf32>
    %394 = arith.mulf %389, %388 : vector<2x32xf32>
    %395 = arith.addf %393, %394 : vector<2x32xf32>
    %396 = math.tanh %395 : vector<2x32xf32>
    %397 = arith.mulf %391, %396 : vector<2x32xf32>
    %c0_205 = arith.constant 0 : index
    %c0_206 = arith.constant 0 : index
    %398 = vector.load %arg8[%c0_205, %c0_206] : memref<2x32xf32, #tpu.memory_space<vmem>>, vector<2x32xf32>
    tpu.vector_store %arg8[%c0_205, %c0_206], %397 {strides = array<i32>} : memref<2x32xf32, #tpu.memory_space<vmem>>, vector<2x32xf32>,
    %c0_207 = arith.constant 0 : index
    %c0_208 = arith.constant 0 : index
    %399 = vector.load %arg10[%c0_207, %c0_208] : memref<2x32xf32, #tpu.memory_space<vmem>>, vector<2x32xf32>
    tpu.vector_store %arg10[%c0_207, %c0_208], %395 {strides = array<i32>} : memref<2x32xf32, #tpu.memory_space<vmem>>, vector<2x32xf32>,
    %400 = arith.truncf %397 : vector<2x32xf32> to vector<2x32xbf16>
    %c6_209 = arith.constant 6 : index
    %c0_210 = arith.constant 0 : index
    %c0_211 = arith.constant 0 : index
    %401 = vector.load %arg4[%c6_209, %c0_210, %c0_211] : memref<8x2x32xbf16, #tpu.memory_space<vmem>>, vector<1x2x32xbf16>
    %402 = vector.shape_cast %401 : vector<1x2x32xbf16> to vector<2x32xbf16>
    %403 = vector.shape_cast %400 : vector<2x32xbf16> to vector<1x2x32xbf16>
    tpu.vector_store %arg4[%c6_209, %c0_210, %c0_211], %403 {strides = array<i32>} : memref<8x2x32xbf16, #tpu.memory_space<vmem>>, vector<1x2x32xbf16>,
    %404 = vector.extract_strided_slice %380 {offsets = [0, 0], sizes = [2, 96], strides = [1, 1]} : vector<2x128xf32> to vector<2x96xf32>
    %405 = arith.negf %404 : vector<2x96xf32>
    %406 = math.exp %405 : vector<2x96xf32>
    %cst_212 = arith.constant 1.000000e+00 : f32
    %407 = vector.broadcast %cst_212 : f32 to vector<2x96xf32>
    %408 = arith.addf %407, %406 : vector<2x96xf32>
    %409 = arith.divf %407, %408 : vector<2x96xf32>
    %410 = vector.extract_strided_slice %380 {offsets = [0, 96], sizes = [2, 32], strides = [1, 1]} : vector<2x128xf32> to vector<2x32xf32>
    %411 = math.tanh %410 : vector<2x32xf32>
    %412 = vector.extract_strided_slice %409 {offsets = [0, 0], sizes = [2, 32], strides = [1, 1]} : vector<2x96xf32> to vector<2x32xf32>
    %413 = vector.extract_strided_slice %409 {offsets = [0, 32], sizes = [2, 32], strides = [1, 1]} : vector<2x96xf32> to vector<2x32xf32>
    %414 = vector.extract_strided_slice %409 {offsets = [0, 64], sizes = [2, 32], strides = [1, 1]} : vector<2x96xf32> to vector<2x32xf32>
    %c0_213 = arith.constant 0 : index
    %c0_214 = arith.constant 0 : index
    %415 = vector.load %arg11[%c0_213, %c0_214] : memref<2x32xf32, #tpu.memory_space<vmem>>, vector<2x32xf32>
    %416 = arith.mulf %413, %415 : vector<2x32xf32>
    %417 = arith.mulf %412, %411 : vector<2x32xf32>
    %418 = arith.addf %416, %417 : vector<2x32xf32>
    %419 = math.tanh %418 : vector<2x32xf32>
    %420 = arith.mulf %414, %419 : vector<2x32xf32>
    %c0_215 = arith.constant 0 : index
    %c0_216 = arith.constant 0 : index
    %421 = vector.load %arg9[%c0_215, %c0_216] : memref<2x32xf32, #tpu.memory_space<vmem>>, vector<2x32xf32>
    tpu.vector_store %arg9[%c0_215, %c0_216], %420 {strides = array<i32>} : memref<2x32xf32, #tpu.memory_space<vmem>>, vector<2x32xf32>,
    %c0_217 = arith.constant 0 : index
    %c0_218 = arith.constant 0 : index
    %422 = vector.load %arg11[%c0_217, %c0_218] : memref<2x32xf32, #tpu.memory_space<vmem>>, vector<2x32xf32>
    tpu.vector_store %arg11[%c0_217, %c0_218], %418 {strides = array<i32>} : memref<2x32xf32, #tpu.memory_space<vmem>>, vector<2x32xf32>,
    %423 = arith.truncf %420 : vector<2x32xf32> to vector<2x32xbf16>
    %c1_219 = arith.constant 1 : index
    %c0_220 = arith.constant 0 : index
    %c0_221 = arith.constant 0 : index
    %424 = vector.load %arg5[%c1_219, %c0_220, %c0_221] : memref<8x2x32xbf16, #tpu.memory_space<vmem>>, vector<1x2x32xbf16>
    %425 = vector.shape_cast %424 : vector<1x2x32xbf16> to vector<2x32xbf16>
    %426 = vector.shape_cast %423 : vector<2x32xbf16> to vector<1x2x32xbf16>
    tpu.vector_store %arg5[%c1_219, %c0_220, %c0_221], %426 {strides = array<i32>} : memref<8x2x32xbf16, #tpu.memory_space<vmem>>, vector<1x2x32xbf16>,
    %c7_222 = arith.constant 7 : index
    %c0_223 = arith.constant 0 : index
    %c0_224 = arith.constant 0 : index
    %427 = vector.load %arg1[%c7_222, %c0_223, %c0_224] : memref<8x2x128xbf16, #tpu.memory_space<vmem>>, vector<1x2x128xbf16>
    %428 = vector.shape_cast %427 : vector<1x2x128xbf16> to vector<2x128xbf16>
    %429 = arith.extf %428 : vector<2x128xbf16> to vector<2x128xf32>
    %c0_225 = arith.constant 0 : index
    %c0_226 = arith.constant 0 : index
    %430 = vector.load %arg8[%c0_225, %c0_226] : memref<2x32xf32, #tpu.memory_space<vmem>>, vector<2x32xf32>
    %431 = arith.truncf %430 : vector<2x32xf32> to vector<2x32xbf16>
    %cst_227 = arith.constant dense<0.000000e+00> : vector<2x128xf32>
    %432 = tpu.matmul %431, %4, %cst_227 {dimension_numbers = #tpu.dot_dimension_numbers<[1], [0], [0], [1], [0, 0, 1, 1], [], []>} : vector<2x32xbf16>, vector<32x128xbf16>, vector<2x128xf32> -> vector<2x128xf32>
    %433 = arith.addf %429, %432 : vector<2x128xf32>
    %c0_228 = arith.constant 0 : index
    %c0_229 = arith.constant 0 : index
    %c0_230 = arith.constant 0 : index
    %434 = vector.load %arg2[%c0_228, %c0_229, %c0_230] : memref<8x2x128xbf16, #tpu.memory_space<vmem>>, vector<1x2x128xbf16>
    %435 = vector.shape_cast %434 : vector<1x2x128xbf16> to vector<2x128xbf16>
    %436 = arith.extf %435 : vector<2x128xbf16> to vector<2x128xf32>
    %c0_231 = arith.constant 0 : index
    %c0_232 = arith.constant 0 : index
    %437 = vector.load %arg9[%c0_231, %c0_232] : memref<2x32xf32, #tpu.memory_space<vmem>>, vector<2x32xf32>
    %438 = arith.truncf %437 : vector<2x32xf32> to vector<2x32xbf16>
    %cst_233 = arith.constant dense<0.000000e+00> : vector<2x128xf32>
    %439 = tpu.matmul %438, %6, %cst_233 {dimension_numbers = #tpu.dot_dimension_numbers<[1], [0], [0], [1], [0, 0, 1, 1], [], []>} : vector<2x32xbf16>, vector<32x128xbf16>, vector<2x128xf32> -> vector<2x128xf32>
    %440 = arith.addf %436, %439 : vector<2x128xf32>
    %441 = vector.extract_strided_slice %433 {offsets = [0, 0], sizes = [2, 96], strides = [1, 1]} : vector<2x128xf32> to vector<2x96xf32>
    %442 = arith.negf %441 : vector<2x96xf32>
    %443 = math.exp %442 : vector<2x96xf32>
    %cst_234 = arith.constant 1.000000e+00 : f32
    %444 = vector.broadcast %cst_234 : f32 to vector<2x96xf32>
    %445 = arith.addf %444, %443 : vector<2x96xf32>
    %446 = arith.divf %444, %445 : vector<2x96xf32>
    %447 = vector.extract_strided_slice %433 {offsets = [0, 96], sizes = [2, 32], strides = [1, 1]} : vector<2x128xf32> to vector<2x32xf32>
    %448 = math.tanh %447 : vector<2x32xf32>
    %449 = vector.extract_strided_slice %446 {offsets = [0, 0], sizes = [2, 32], strides = [1, 1]} : vector<2x96xf32> to vector<2x32xf32>
    %450 = vector.extract_strided_slice %446 {offsets = [0, 32], sizes = [2, 32], strides = [1, 1]} : vector<2x96xf32> to vector<2x32xf32>
    %451 = vector.extract_strided_slice %446 {offsets = [0, 64], sizes = [2, 32], strides = [1, 1]} : vector<2x96xf32> to vector<2x32xf32>
    %c0_235 = arith.constant 0 : index
    %c0_236 = arith.constant 0 : index
    %452 = vector.load %arg10[%c0_235, %c0_236] : memref<2x32xf32, #tpu.memory_space<vmem>>, vector<2x32xf32>
    %453 = arith.mulf %450, %452 : vector<2x32xf32>
    %454 = arith.mulf %449, %448 : vector<2x32xf32>
    %455 = arith.addf %453, %454 : vector<2x32xf32>
    %456 = math.tanh %455 : vector<2x32xf32>
    %457 = arith.mulf %451, %456 : vector<2x32xf32>
    %c0_237 = arith.constant 0 : index
    %c0_238 = arith.constant 0 : index
    %458 = vector.load %arg8[%c0_237, %c0_238] : memref<2x32xf32, #tpu.memory_space<vmem>>, vector<2x32xf32>
    tpu.vector_store %arg8[%c0_237, %c0_238], %457 {strides = array<i32>} : memref<2x32xf32, #tpu.memory_space<vmem>>, vector<2x32xf32>,
    %c0_239 = arith.constant 0 : index
    %c0_240 = arith.constant 0 : index
    %459 = vector.load %arg10[%c0_239, %c0_240] : memref<2x32xf32, #tpu.memory_space<vmem>>, vector<2x32xf32>
    tpu.vector_store %arg10[%c0_239, %c0_240], %455 {strides = array<i32>} : memref<2x32xf32, #tpu.memory_space<vmem>>, vector<2x32xf32>,
    %460 = arith.truncf %457 : vector<2x32xf32> to vector<2x32xbf16>
    %c7_241 = arith.constant 7 : index
    %c0_242 = arith.constant 0 : index
    %c0_243 = arith.constant 0 : index
    %461 = vector.load %arg4[%c7_241, %c0_242, %c0_243] : memref<8x2x32xbf16, #tpu.memory_space<vmem>>, vector<1x2x32xbf16>
    %462 = vector.shape_cast %461 : vector<1x2x32xbf16> to vector<2x32xbf16>
    %463 = vector.shape_cast %460 : vector<2x32xbf16> to vector<1x2x32xbf16>
    tpu.vector_store %arg4[%c7_241, %c0_242, %c0_243], %463 {strides = array<i32>} : memref<8x2x32xbf16, #tpu.memory_space<vmem>>, vector<1x2x32xbf16>,
    %464 = vector.extract_strided_slice %440 {offsets = [0, 0], sizes = [2, 96], strides = [1, 1]} : vector<2x128xf32> to vector<2x96xf32>
    %465 = arith.negf %464 : vector<2x96xf32>
    %466 = math.exp %465 : vector<2x96xf32>
    %cst_244 = arith.constant 1.000000e+00 : f32
    %467 = vector.broadcast %cst_244 : f32 to vector<2x96xf32>
    %468 = arith.addf %467, %466 : vector<2x96xf32>
    %469 = arith.divf %467, %468 : vector<2x96xf32>
    %470 = vector.extract_strided_slice %440 {offsets = [0, 96], sizes = [2, 32], strides = [1, 1]} : vector<2x128xf32> to vector<2x32xf32>
    %471 = math.tanh %470 : vector<2x32xf32>
    %472 = vector.extract_strided_slice %469 {offsets = [0, 0], sizes = [2, 32], strides = [1, 1]} : vector<2x96xf32> to vector<2x32xf32>
    %473 = vector.extract_strided_slice %469 {offsets = [0, 32], sizes = [2, 32], strides = [1, 1]} : vector<2x96xf32> to vector<2x32xf32>
    %474 = vector.extract_strided_slice %469 {offsets = [0, 64], sizes = [2, 32], strides = [1, 1]} : vector<2x96xf32> to vector<2x32xf32>
    %c0_245 = arith.constant 0 : index
    %c0_246 = arith.constant 0 : index
    %475 = vector.load %arg11[%c0_245, %c0_246] : memref<2x32xf32, #tpu.memory_space<vmem>>, vector<2x32xf32>
    %476 = arith.mulf %473, %475 : vector<2x32xf32>
    %477 = arith.mulf %472, %471 : vector<2x32xf32>
    %478 = arith.addf %476, %477 : vector<2x32xf32>
    %479 = math.tanh %478 : vector<2x32xf32>
    %480 = arith.mulf %474, %479 : vector<2x32xf32>
    %c0_247 = arith.constant 0 : index
    %c0_248 = arith.constant 0 : index
    %481 = vector.load %arg9[%c0_247, %c0_248] : memref<2x32xf32, #tpu.memory_space<vmem>>, vector<2x32xf32>
    tpu.vector_store %arg9[%c0_247, %c0_248], %480 {strides = array<i32>} : memref<2x32xf32, #tpu.memory_space<vmem>>, vector<2x32xf32>,
    %c0_249 = arith.constant 0 : index
    %c0_250 = arith.constant 0 : index
    %482 = vector.load %arg11[%c0_249, %c0_250] : memref<2x32xf32, #tpu.memory_space<vmem>>, vector<2x32xf32>
    tpu.vector_store %arg11[%c0_249, %c0_250], %478 {strides = array<i32>} : memref<2x32xf32, #tpu.memory_space<vmem>>, vector<2x32xf32>,
    %483 = arith.truncf %480 : vector<2x32xf32> to vector<2x32xbf16>
    %c0_251 = arith.constant 0 : index
    %c0_252 = arith.constant 0 : index
    %c0_253 = arith.constant 0 : index
    %484 = vector.load %arg5[%c0_251, %c0_252, %c0_253] : memref<8x2x32xbf16, #tpu.memory_space<vmem>>, vector<1x2x32xbf16>
    %485 = vector.shape_cast %484 : vector<1x2x32xbf16> to vector<2x32xbf16>
    %486 = vector.shape_cast %483 : vector<2x32xbf16> to vector<1x2x32xbf16>
    tpu.vector_store %arg5[%c0_251, %c0_252, %c0_253], %486 {strides = array<i32>} : memref<8x2x32xbf16, #tpu.memory_space<vmem>>, vector<1x2x32xbf16>,
    %c0_i32_254 = arith.constant 0 : i32
    %487 = arith.cmpi eq, %arg0, %c0_i32_254 : i32
    %488 = arith.extui %487 : i1 to i32
    %c0_i32_255 = arith.constant 0 : i32
    %489 = arith.cmpi ne, %488, %c0_i32_255 : i32
    scf.if %489 {
      %c0_256 = arith.constant 0 : index
      %c0_257 = arith.constant 0 : index
      %490 = vector.load %arg8[%c0_256, %c0_257] : memref<2x32xf32, #tpu.memory_space<vmem>>, vector<2x32xf32>
      %c0_258 = arith.constant 0 : index
      %c0_259 = arith.constant 0 : index
      %c0_260 = arith.constant 0 : index
      %491 = vector.load %arg6[%c0_258, %c0_259, %c0_260] : memref<2x2x32xf32, #tpu.memory_space<vmem>>, vector<1x2x32xf32>
      %492 = vector.shape_cast %491 : vector<1x2x32xf32> to vector<2x32xf32>
      %493 = vector.shape_cast %490 : vector<2x32xf32> to vector<1x2x32xf32>
      tpu.vector_store %arg6[%c0_258, %c0_259, %c0_260], %493 {strides = array<i32>} : memref<2x2x32xf32, #tpu.memory_space<vmem>>, vector<1x2x32xf32>,
      %c0_261 = arith.constant 0 : index
      %c0_262 = arith.constant 0 : index
      %494 = vector.load %arg10[%c0_261, %c0_262] : memref<2x32xf32, #tpu.memory_space<vmem>>, vector<2x32xf32>
      %c0_263 = arith.constant 0 : index
      %c0_264 = arith.constant 0 : index
      %c0_265 = arith.constant 0 : index
      %495 = vector.load %arg7[%c0_263, %c0_264, %c0_265] : memref<2x2x32xf32, #tpu.memory_space<vmem>>, vector<1x2x32xf32>
      %496 = vector.shape_cast %495 : vector<1x2x32xf32> to vector<2x32xf32>
      %497 = vector.shape_cast %494 : vector<2x32xf32> to vector<1x2x32xf32>
      tpu.vector_store %arg7[%c0_263, %c0_264, %c0_265], %497 {strides = array<i32>} : memref<2x2x32xf32, #tpu.memory_space<vmem>>, vector<1x2x32xf32>,
      %c0_266 = arith.constant 0 : index
      %c0_267 = arith.constant 0 : index
      %498 = vector.load %arg9[%c0_266, %c0_267] : memref<2x32xf32, #tpu.memory_space<vmem>>, vector<2x32xf32>
      %c1_268 = arith.constant 1 : index
      %c0_269 = arith.constant 0 : index
      %c0_270 = arith.constant 0 : index
      %499 = vector.load %arg6[%c1_268, %c0_269, %c0_270] : memref<2x2x32xf32, #tpu.memory_space<vmem>>, vector<1x2x32xf32>
      %500 = vector.shape_cast %499 : vector<1x2x32xf32> to vector<2x32xf32>
      %501 = vector.shape_cast %498 : vector<2x32xf32> to vector<1x2x32xf32>
      tpu.vector_store %arg6[%c1_268, %c0_269, %c0_270], %501 {strides = array<i32>} : memref<2x2x32xf32, #tpu.memory_space<vmem>>, vector<1x2x32xf32>,
      %c0_271 = arith.constant 0 : index
      %c0_272 = arith.constant 0 : index
      %502 = vector.load %arg11[%c0_271, %c0_272] : memref<2x32xf32, #tpu.memory_space<vmem>>, vector<2x32xf32>
      %c1_273 = arith.constant 1 : index
      %c0_274 = arith.constant 0 : index
      %c0_275 = arith.constant 0 : index
      %503 = vector.load %arg7[%c1_273, %c0_274, %c0_275] : memref<2x2x32xf32, #tpu.memory_space<vmem>>, vector<1x2x32xf32>
      %504 = vector.shape_cast %503 : vector<1x2x32xf32> to vector<2x32xf32>
      %505 = vector.shape_cast %502 : vector<2x32xf32> to vector<1x2x32xf32>
      tpu.vector_store %arg7[%c1_273, %c0_274, %c0_275], %505 {strides = array<i32>} : memref<2x2x32xf32, #tpu.memory_space<vmem>>, vector<1x2x32xf32>,
    } else {
    }
    return
  }
  func.func @transform_0(%arg0: i32) -> (i32, i32, i32) {
    %c0_i32 = arith.constant 0 : i32
    %c0_i32_0 = arith.constant 0 : i32
    %c0_i32_1 = arith.constant 0 : i32
    return %arg0, %c0_i32, %c0_i32_0 : i32, i32, i32
  }
  func.func @transform_1(%arg0: i32) -> (i32, i32, i32) {
    %c0_i32 = arith.constant 0 : i32
    %0 = arith.subi %c0_i32, %arg0 : i32
    %c0_i32_0 = arith.constant 0 : i32
    %c0_i32_1 = arith.constant 0 : i32
    %c0_i32_2 = arith.constant 0 : i32
    return %0, %c0_i32_0, %c0_i32_1 : i32, i32, i32
  }
  func.func @transform_2(%arg0: i32) -> (i32, i32, i32) {
    %c0_i32 = arith.constant 0 : i32
    %c0_i32_0 = arith.constant 0 : i32
    %c0_i32_1 = arith.constant 0 : i32
    %c0_i32_2 = arith.constant 0 : i32
    return %c0_i32, %c0_i32_0, %c0_i32_1 : i32, i32, i32
  }
  func.func @transform_3(%arg0: i32) -> (i32, i32, i32) {
    %c0_i32 = arith.constant 0 : i32
    %c0_i32_0 = arith.constant 0 : i32
    %c0_i32_1 = arith.constant 0 : i32
    return %arg0, %c0_i32, %c0_i32_0 : i32, i32, i32
  }
  func.func @transform_4(%arg0: i32) -> (i32, i32, i32) {
    %c0_i32 = arith.constant 0 : i32
    %0 = arith.subi %c0_i32, %arg0 : i32
    %c0_i32_0 = arith.constant 0 : i32
    %c0_i32_1 = arith.constant 0 : i32
    %c0_i32_2 = arith.constant 0 : i32
    return %0, %c0_i32_0, %c0_i32_1 : i32, i32, i32
  }
  func.func @transform_5(%arg0: i32) -> (i32, i32, i32) {
    %c0_i32 = arith.constant 0 : i32
    %c0_i32_0 = arith.constant 0 : i32
    %c0_i32_1 = arith.constant 0 : i32
    %c0_i32_2 = arith.constant 0 : i32
    return %c0_i32, %c0_i32_0, %c0_i32_1 : i32, i32, i32
  }
  func.func @transform_6(%arg0: i32) -> (i32, i32, i32) {
    %c0_i32 = arith.constant 0 : i32
    %c0_i32_0 = arith.constant 0 : i32
    %c0_i32_1 = arith.constant 0 : i32
    %c0_i32_2 = arith.constant 0 : i32
    return %c0_i32, %c0_i32_0, %c0_i32_1 : i32, i32, i32
  }
}

</mosaic_0001>

<llo_original>
// kernel: tpu_custom_call.1
$region0: #{tpu_custom_call.1}
  #allocation0 [shape = 'u32[]', space=smem, size = 0x4, offset = 0x4, fixed_abs, tag = 'smem constant byte address 0x4 - core index']
  #allocation1 [shape = 'u32[72,128]{1,0:T(1,128)}', space=vmem, size = 0x9000, scoped, tag = 'internal scratch']
  #allocation2 [shape = 'f32[2,32]{1,0:T(2,128)}', space=vmem, size = 0x400, scoped, tag = 'scratch operand']
  #allocation3 [shape = 'f32[2,32]{1,0:T(2,128)}', space=vmem, size = 0x400, scoped, tag = 'scratch operand']
  #allocation4 [shape = 'f32[2,32]{1,0:T(2,128)}', space=vmem, size = 0x400, scoped, tag = 'scratch operand']
  #allocation5 [shape = 'f32[2,32]{1,0:T(2,128)}', space=vmem, size = 0x400, scoped, tag = 'scratch operand']
  %s0 = inlined_call_operand.hbm [shape: bf16[8,2,128], index: 0, kind: input, shape index: {}]
  %s1 = inlined_call_operand.hbm [shape: bf16[8,2,128], index: 1, kind: input, shape index: {}]
  %s2 = inlined_call_operand.hbm [shape: bf16[2,32,128], index: 2, kind: input, shape index: {}]
  %s3 = inlined_call_operand.hbm [shape: bf16[8,2,32], index: 3, kind: output, shape index: {0}]
  %s4 = inlined_call_operand.hbm [shape: bf16[8,2,32], index: 4, kind: output, shape index: {1}]
  %s5 = inlined_call_operand.hbm [shape: f32[2,2,32], index: 5, kind: output, shape index: {2}]
  %s6 = inlined_call_operand.hbm [shape: f32[2,2,32], index: 6, kind: output, shape index: {3}]
  %7 = xla_tuple %s3, %s4, %s5, %s6
  %s8 = sld [smem:[#allocation0]]
  $region66: #{tpu_custom_call.1} parent=0
    _
  %s10 = ssub.s32 1, %s8
  %s11 = scalar_select 0, %s10, %s8
  $region1: #{tpu_custom_call.1} parent=0
    #allocation6 [shape = 'u8[4096]{0}', space=vmem, size = 0x1000, scoped, tag = 'input window, operand 0, single buffered']
    #allocation7 [shape = 's32[1]{0}', space=sflag, size = 0x4, scoped, tag = 'scoped memory for tpu_custom_call.1']
    #allocation8 [shape = 's32[1]{0}', space=sflag, size = 0x4, scoped, tag = 'scoped memory for tpu_custom_call.1']
    #allocation9 [shape = 'u8[4096]{0}', space=vmem, size = 0x1000, scoped, tag = 'input window, operand 1, single buffered']
    #allocation10 [shape = 's32[1]{0}', space=sflag, size = 0x4, scoped, tag = 'scoped memory for tpu_custom_call.1']
    #allocation11 [shape = 'u8[16384]{0}', space=vmem, size = 0x4000, scoped, tag = 'input window, operand 2, single buffered']
    #allocation12 [shape = 'u8[4096]{0}', space=vmem, size = 0x1000, scoped, tag = 'output window, operand 0, single buffered']
    #allocation13 [shape = 'u8[4096]{0}', space=vmem, size = 0x1000, scoped, tag = 'output window, operand 1, single buffered']
    #allocation14 [shape = 's32[1]{0}', space=sflag, size = 0x4, scoped, tag = 'scoped memory for tpu_custom_call.1']
    #allocation15 [shape = 'u8[2048]{0}', space=vmem, size = 0x800, scoped, tag = 'output window, operand 2, single buffered']
    #allocation16 [shape = 'u8[2048]{0}', space=vmem, size = 0x800, scoped, tag = 'output window, operand 3, single buffered']
    #allocation17 [shape = 's32[1]{0}', space=sflag, size = 0x4, scoped, tag = 'scoped memory for tpu_custom_call.1']
    %12 = vsyncpa [#allocation7], 0
    %13 = vsyncpa [#allocation10], 0
    %14 = vsyncpa [#allocation8], 0
    %15 = vsyncpa [#allocation14], 0
    %16 = vsyncpa [#allocation17], 0
    // Predicated region
    $region2: #{tpu_custom_call.1} parent=1 // pred_check
      _
    $region3: #{tpu_custom_call.1} parent=1 // pred_check_branch
      %18 = sbr.rel (0) target = $region5
    $region4: #{tpu_custom_call.1} parent=1 // pred_region
      %20 = vsyncadd [#allocation7], 0
      %s21 = sshll.u32 %s0, 4
      %s22 = int_to_ptr.hbm [resolvable:$true] %s21
      %s23 = sshll.u32 [#allocation6], 4
      %s24 = int_to_ptr.vmem [resolvable:$true] %s23
      %29 = dma.hbm_to_vmem [thread:$0]  %s22, 128, %s24, [#allocation7], 16, 16, 1
    $region5: #{tpu_custom_call.1} parent=1 // pred_fallthru
      _
    // Predicated region
    $region6: #{tpu_custom_call.1} parent=1 // pred_check
      _
    $region7: #{tpu_custom_call.1} parent=1 // pred_check_branch
      %31 = sbr.rel (0) target = $region9
    $region8: #{tpu_custom_call.1} parent=1 // pred_region
      %s32 = ssub.s32 0, 0
      %s33 = smul.u32 8, %s32
      %35 = vsyncadd [#allocation10], 0
      %s36 = scalar_lea.hbm %s1, %s33
      %s37 = sshll.u32 %s36, 4
      %s38 = int_to_ptr.hbm [resolvable:$true] %s37
      %s39 = sshll.u32 [#allocation9], 4
      %s40 = int_to_ptr.vmem [resolvable:$true] %s39
      %45 = dma.hbm_to_vmem [thread:$0]  %s38, 128, %s40, [#allocation10], 16, 16, 1
    $region9: #{tpu_custom_call.1} parent=1 // pred_fallthru
      _
    // Predicated region
    $region10: #{tpu_custom_call.1} parent=1 // pred_check
      _
    $region11: #{tpu_custom_call.1} parent=1 // pred_check_branch
      %47 = sbr.rel (0) target = $region13
    $region12: #{tpu_custom_call.1} parent=1 // pred_region
      %49 = vsyncadd [#allocation10], 0
      %s50 = sshll.u32 %s2, 4
      %s51 = int_to_ptr.hbm [resolvable:$true] %s50
      %s52 = sshll.u32 [#allocation11], 4
      %s53 = int_to_ptr.vmem [resolvable:$true] %s52
      %58 = dma.hbm_to_vmem [thread:$0]  %s51, 512, %s53, [#allocation10], 64, 64, 4
    $region13: #{tpu_custom_call.1} parent=1 // pred_fallthru
      _
    // Predicated region
    $region14: #{tpu_custom_call.1} parent=1 // pred_check
      _
    $region15: #{tpu_custom_call.1} parent=1 // pred_check_branch
      %60 = sbr.rel (0) target = $region17
    $region16: #{tpu_custom_call.1} parent=1 // pred_region
      %62 = dma.done [#allocation7], 128
    $region17: #{tpu_custom_call.1} parent=1 // pred_fallthru
      _
    // Predicated region
    $region18: #{tpu_custom_call.1} parent=1 // pred_check
      _
    $region19: #{tpu_custom_call.1} parent=1 // pred_check_branch
      %64 = sbr.rel (0) target = $region21
    $region20: #{tpu_custom_call.1} parent=1 // pred_region
      %66 = dma.done [#allocation10], 128
    $region21: #{tpu_custom_call.1} parent=1 // pred_fallthru
      _
    // Predicated region
    $region22: #{tpu_custom_call.1} parent=1 // pred_check
      _
    $region23: #{tpu_custom_call.1} parent=1 // pred_check_branch
      %68 = sbr.rel (0) target = $region25
    $region24: #{tpu_custom_call.1} parent=1 // pred_region
      %70 = dma.done [#allocation10], 512
    $region25: #{tpu_custom_call.1} parent=1 // pred_fallthru
      _
    %s71 = ssub.s32 0, 0
    %s72 = smul.u32 8, %s71
    %s73 = ssub.s32 0, 0
    %s74 = smul.u32 8, %s73
    %p76 = scmp.eq.s32.totalorder 0, 0
    // Predicated region
    $region26: #{tpu_custom_call.1} parent=1 // pred_check
      %p77 = pneg %p76
    $region27: #{tpu_custom_call.1} parent=1 // pred_check_branch
      %79 = sbr.rel (%p77) target = $region29
    $region28: #{tpu_custom_call.1} parent=1 // pred_region
      %vm80 = vcmask 254976
      %81 = vst.msk [vmem:[#allocation2] sm:$0x3] %vm80, 0.0
      %82 = vst.msk [vmem:[#allocation4] sm:$0x3] %vm80, 0.0
      %83 = vst.msk [vmem:[#allocation3] sm:$0x3] %vm80, 0.0
      %84 = vst.msk [vmem:[#allocation5] sm:$0x3] %vm80, 0.0
    $region29: #{tpu_custom_call.1} parent=1 // pred_fallthru
      _
    %v85 = vld [vmem:[#allocation11] sm:$0xf]
    %v86 = vld [vmem:[#allocation11 + $0x4] sm:$0xf]
    %v87 = vld [vmem:[#allocation11 + $0x8] sm:$0xf]
    %v88 = vld [vmem:[#allocation11 + $0xc] sm:$0xf]
    %s89 = scalar_lea.vmem [#allocation11], 16
    %v90 = vld [vmem:[%s89] sm:$0xf]
    %v91 = vld [vmem:[%s89 + $0x4] sm:$0xf]
    %v92 = vld [vmem:[%s89 + $0x8] sm:$0xf]
    %v93 = vld [vmem:[%s89 + $0xc] sm:$0xf]
    %v94 = vld [vmem:[#allocation6] sm:$0x1]
    %v95 = vunpack.c.l.bf16 %v94
    %v96 = vld [vmem:[#allocation2] sm:$0x3]
    %v97 = vpack.c.bf16 %v96, %v96
    %v102 = vunpack.c.l.b16 %v85
    %v103 = vunpack.c.l.b16 %v86
    %v104 = vunpack.c.l.b16 %v87
    %v105 = vunpack.c.l.b16 %v88
    %v106 = vpack.c.b16 %v103, %v102
    %v107 = vpack.c.b16 %v105, %v104
    %vm110 = vcmask 261120
    %v112 = vsel %vm110, %v97, 0
    %114 = vmatpush.bf16.msra.mxu0 0
    %115 = vmatpush.bf16.msra.mxu0 0
    %116 = vmatpush.bf16.msra.mxu0 0
    %117 = vmatpush.bf16.msra.mxu0 0
    %118 = vmatpush.bf16.msra.mxu0 0
    %119 = vmatpush.bf16.msra.mxu0 0
    %120 = vmatpush.bf16.msra.mxu0 %v107
    %121 = vmatpush.bf16.msra.mxu0 %v106
    %122 = vmatmul.bf16.gmra.mxu0 %v112
    %v123 = vpop.f32.mrf.mxu0
    %v124 = vadd.f32 0.0, %v123
    %v125 = vpop.f32.mrf.mxu0
    %126 = vdwg.mxu0
    %v127 = vadd.f32 %v95, %v124
    %s128 = scalar_lea.vmem [#allocation9], 7
    %v129 = vld [vmem:[%s128] sm:$0x1]
    %v130 = vunpack.c.l.bf16 %v129
    %v131 = vld [vmem:[#allocation3] sm:$0x3]
    %v132 = vpack.c.bf16 %v131, %v131
    %v137 = vunpack.c.l.b16 %v90
    %v138 = vunpack.c.l.b16 %v91
    %v139 = vunpack.c.l.b16 %v92
    %v140 = vunpack.c.l.b16 %v93
    %v141 = vpack.c.b16 %v138, %v137
    %v142 = vpack.c.b16 %v140, %v139
    %v146 = vsel %vm110, %v132, 0
    %148 = vmatpush.bf16.msra.mxu0 0
    %149 = vmatpush.bf16.msra.mxu0 0
    %150 = vmatpush.bf16.msra.mxu0 0
    %151 = vmatpush.bf16.msra.mxu0 0
    %152 = vmatpush.bf16.msra.mxu0 0
    %153 = vmatpush.bf16.msra.mxu0 0
    %154 = vmatpush.bf16.msra.mxu0 %v142
    %155 = vmatpush.bf16.msra.mxu0 %v141
    %156 = vmatmul.bf16.gmra.mxu0 %v146
    %v157 = vpop.f32.mrf.mxu0
    %v158 = vadd.f32 0.0, %v157
    %v159 = vpop.f32.mrf.mxu0
    %160 = vdwg.mxu0
    %v161 = vadd.f32 %v130, %v158
    %v162 = vxor.u32 %v127, 2147483648
    %v163 = vmul.f32 %v162, 1.442695
    %v164 = vpow.pop %v163
    %v165 = vadd.f32 %v164, 1.0
    %v166 = vrcp.pop %v165
    %v167 = vmul.f32 %v165, %v166
    %v168 = vsub.f32 1.0, %v167
    %v169 = vmul.f32 %v166, %v168
    %v170 = vadd.f32 %v166, %v169
    %vm171 = vweird.f32 %v165
    %vm172 = vweird.f32 %v166
    %vm173 = vmor %vm171, %vm172
    %v174 = vsel %vm173, %v166, %v170
    %v175 = vand.u32 2147483647, %v165
    %vm176 = vcmp.eq.f32.partialorder %v175, 8.507059e+37
    %v177 = vand.u32 %v165, 2147483648
    %v178 = vor.u32 1.1754944e-38, %v177
    %v179 = vsel %vm176, %v178, %v174
    %v180 = vmul.f32 1.0, %v179
    %v181 = vtanh.pop %v127
    %v182 = vld [vmem:[#allocation4] sm:$0x3]
    %184 = vrot.lane.b32.xlu0 %v182, 32
    %v185 = vpop.permute.xlu0 %184
    %v187 = vmul.f32 %v180, %v185
    %189 = vrot.lane.b32.xlu0 %v181, 32
    %v190 = vpop.permute.xlu0 %189
    %v192 = vmul.f32 %v180, %v190
    %194 = vrot.lane.b32.xlu0 %v192, 32
    %v195 = vpop.permute.xlu0 %194
    %v197 = vadd.f32 %v187, %v195
    %v198 = vtanh.pop %v197
    %200 = vrot.lane.b32.xlu0 %v198, 32
    %v201 = vpop.permute.xlu0 %200
    %v203 = vmul.f32 %v180, %v201
    %205 = vst [vmem:[#allocation1] ss:$4 sm:$0xff] %v203
    %v206 = vld.sshfl [vmem:[#allocation1] sm:$0xff pattern:$0x73625140]
    %207 = vrot.lane.b32.xlu0 %v206, 64
    %v208 = vpop.permute.xlu0 %207
    %vm210 = vcmask 254976
    %211 = vst.msk [vmem:[#allocation2] sm:$0x3] %vm210, %v208
    %213 = vst [vmem:[#allocation1] ss:$4 sm:$0xff] %v197
    %v214 = vld.sshfl [vmem:[#allocation1] sm:$0xff pattern:$0x73625140]
    %215 = vrot.lane.b32.xlu0 %v214, 96
    %v216 = vpop.permute.xlu0 %215
    %218 = vst.msk [vmem:[#allocation4] sm:$0x3] %vm210, %v216
    %v219 = vpack.c.bf16 %v203, %v203
    %v221 = vrot.slane %v219, 3
    %vm222 = vcmask 1040384
    %v225 = vsel %vm222, %v219, %v221
    %227 = vrot.lane.b32.xlu0 %v225, 64
    %v228 = vpop.permute.xlu0 %227
    %vm230 = vcmask 253952
    %231 = vst.msk [vmem:[#allocation12] sm:$0x1] %vm230, %v228
    %v232 = vxor.u32 %v161, 2147483648
    %v233 = vmul.f32 %v232, 1.442695
    %v234 = vpow.pop %v233
    %v235 = vadd.f32 %v234, 1.0
    %v236 = vrcp.pop %v235
    %v237 = vmul.f32 %v235, %v236
    %v238 = vsub.f32 1.0, %v237
    %v239 = vmul.f32 %v236, %v238
    %v240 = vadd.f32 %v236, %v239
    %vm241 = vweird.f32 %v235
    %vm242 = vweird.f32 %v236
    %vm243 = vmor %vm241, %vm242
    %v244 = vsel %vm243, %v236, %v240
    %v245 = vand.u32 2147483647, %v235
    %vm246 = vcmp.eq.f32.partialorder %v245, 8.507059e+37
    %v247 = vand.u32 %v235, 2147483648
    %v248 = vor.u32 1.1754944e-38, %v247
    %v249 = vsel %vm246, %v248, %v244
    %v250 = vmul.f32 1.0, %v249
    %v251 = vtanh.pop %v161
    %v252 = vld [vmem:[#allocation5] sm:$0x3]
    %254 = vrot.lane.b32.xlu0 %v252, 32
    %v255 = vpop.permute.xlu0 %254
    %v257 = vmul.f32 %v250, %v255
    %259 = vrot.lane.b32.xlu0 %v251, 32
    %v260 = vpop.permute.xlu0 %259
    %v262 = vmul.f32 %v250, %v260
    %264 = vrot.lane.b32.xlu0 %v262, 32
    %v265 = vpop.permute.xlu0 %264
    %v267 = vadd.f32 %v257, %v265
    %v268 = vtanh.pop %v267
    %270 = vrot.lane.b32.xlu0 %v268, 32
    %v271 = vpop.permute.xlu0 %270
    %v273 = vmul.f32 %v250, %v271
    %275 = vst [vmem:[#allocation1] ss:$4 sm:$0xff] %v273
    %v276 = vld.sshfl [vmem:[#allocation1] sm:$0xff pattern:$0x73625140]
    %277 = vrot.lane.b32.xlu0 %v276, 64
    %v278 = vpop.permute.xlu0 %277
    %280 = vst.msk [vmem:[#allocation3] sm:$0x3] %vm210, %v278
    %282 = vst [vmem:[#allocation1] ss:$4 sm:$0xff] %v267
    %v283 = vld.sshfl [vmem:[#allocation1] sm:$0xff pattern:$0x73625140]
    %284 = vrot.lane.b32.xlu0 %v283, 96
    %v285 = vpop.permute.xlu0 %284
    %287 = vst.msk [vmem:[#allocation5] sm:$0x3] %vm210, %v285
    %v288 = vpack.c.bf16 %v273, %v273
    %v290 = vrot.slane %v288, 3
    %v293 = vsel %vm222, %v288, %v290
    %295 = vrot.lane.b32.xlu0 %v293, 64
    %v296 = vpop.permute.xlu0 %295
    %s298 = scalar_lea.vmem [#allocation13], 7
    %299 = vst.msk [vmem:[%s298] sm:$0x1] %vm230, %v296
    %s300 = scalar_lea.vmem [#allocation6], 1
    %v301 = vld [vmem:[%s300] sm:$0x1]
    %v302 = vunpack.c.l.bf16 %v301
    %v303 = vld [vmem:[#allocation2] sm:$0x3]
    %v304 = vpack.c.bf16 %v303, %v303
    %v306 = vsel %vm110, %v304, 0
    %308 = vmatpush.bf16.msra.mxu0 0
    %309 = vmatpush.bf16.msra.mxu0 0
    %310 = vmatpush.bf16.msra.mxu0 0
    %311 = vmatpush.bf16.msra.mxu0 0
    %312 = vmatpush.bf16.msra.mxu0 0
    %313 = vmatpush.bf16.msra.mxu0 0
    %314 = vmatpush.bf16.msra.mxu0 %v107
    %315 = vmatpush.bf16.msra.mxu0 %v106
    %316 = vmatmul.bf16.gmra.mxu0 %v306
    %v317 = vpop.f32.mrf.mxu0
    %v318 = vadd.f32 0.0, %v317
    %v319 = vpop.f32.mrf.mxu0
    %320 = vdwg.mxu0
    %v321 = vadd.f32 %v302, %v318
    %s322 = scalar_lea.vmem [#allocation9], 6
    %v323 = vld [vmem:[%s322] sm:$0x1]
    %v324 = vunpack.c.l.bf16 %v323
    %v325 = vld [vmem:[#allocation3] sm:$0x3]
    %v326 = vpack.c.bf16 %v325, %v325
    %v328 = vsel %vm110, %v326, 0
    %330 = vmatpush.bf16.msra.mxu0 0
    %331 = vmatpush.bf16.msra.mxu0 0
    %332 = vmatpush.bf16.msra.mxu0 0
    %333 = vmatpush.bf16.msra.mxu0 0
    %334 = vmatpush.bf16.msra.mxu0 0
    %335 = vmatpush.bf16.msra.mxu0 0
    %336 = vmatpush.bf16.msra.mxu0 %v142
    %337 = vmatpush.bf16.msra.mxu0 %v141
    %338 = vmatmul.bf16.gmra.mxu0 %v328
    %v339 = vpop.f32.mrf.mxu0
    %v340 = vadd.f32 0.0, %v339
    %v341 = vpop.f32.mrf.mxu0
    %342 = vdwg.mxu0
    %v343 = vadd.f32 %v324, %v340
    %v344 = vxor.u32 %v321, 2147483648
    %v345 = vmul.f32 %v344, 1.442695
    %v346 = vpow.pop %v345
    %v347 = vadd.f32 %v346, 1.0
    %v348 = vrcp.pop %v347
    %v349 = vmul.f32 %v347, %v348
    %v350 = vsub.f32 1.0, %v349
    %v351 = vmul.f32 %v348, %v350
    %v352 = vadd.f32 %v348, %v351
    %vm353 = vweird.f32 %v347
    %vm354 = vweird.f32 %v348
    %vm355 = vmor %vm353, %vm354
    %v356 = vsel %vm355, %v348, %v352
    %v357 = vand.u32 2147483647, %v347
    %vm358 = vcmp.eq.f32.partialorder %v357, 8.507059e+37
    %v359 = vand.u32 %v347, 2147483648
    %v360 = vor.u32 1.1754944e-38, %v359
    %v361 = vsel %vm358, %v360, %v356
    %v362 = vmul.f32 1.0, %v361
    %v363 = vtanh.pop %v321
    %v364 = vld [vmem:[#allocation4] sm:$0x3]
    %366 = vrot.lane.b32.xlu0 %v364, 32
    %v367 = vpop.permute.xlu0 %366
    %v369 = vmul.f32 %v362, %v367
    %371 = vrot.lane.b32.xlu0 %v363, 32
    %v372 = vpop.permute.xlu0 %371
    %v374 = vmul.f32 %v362, %v372
    %376 = vrot.lane.b32.xlu0 %v374, 32
    %v377 = vpop.permute.xlu0 %376
    %v379 = vadd.f32 %v369, %v377
    %v380 = vtanh.pop %v379
    %382 = vrot.lane.b32.xlu0 %v380, 32
    %v383 = vpop.permute.xlu0 %382
    %v385 = vmul.f32 %v362, %v383
    %387 = vst [vmem:[#allocation1] ss:$4 sm:$0xff] %v385
    %v388 = vld.sshfl [vmem:[#allocation1] sm:$0xff pattern:$0x73625140]
    %389 = vrot.lane.b32.xlu0 %v388, 64
    %v390 = vpop.permute.xlu0 %389
    %392 = vst.msk [vmem:[#allocation2] sm:$0x3] %vm210, %v390
    %394 = vst [vmem:[#allocation1] ss:$4 sm:$0xff] %v379
    %v395 = vld.sshfl [vmem:[#allocation1] sm:$0xff pattern:$0x73625140]
    %396 = vrot.lane.b32.xlu0 %v395, 96
    %v397 = vpop.permute.xlu0 %396
    %399 = vst.msk [vmem:[#allocation4] sm:$0x3] %vm210, %v397
    %v400 = vpack.c.bf16 %v385, %v385
    %v402 = vrot.slane %v400, 3
    %v405 = vsel %vm222, %v400, %v402
    %407 = vrot.lane.b32.xlu0 %v405, 64
    %v408 = vpop.permute.xlu0 %407
    %s410 = scalar_lea.vmem [#allocation12], 1
    %411 = vst.msk [vmem:[%s410] sm:$0x1] %vm230, %v408
    %v412 = vxor.u32 %v343, 2147483648
    %v413 = vmul.f32 %v412, 1.442695
    %v414 = vpow.pop %v413
    %v415 = vadd.f32 %v414, 1.0
    %v416 = vrcp.pop %v415
    %v417 = vmul.f32 %v415, %v416
    %v418 = vsub.f32 1.0, %v417
    %v419 = vmul.f32 %v416, %v418
    %v420 = vadd.f32 %v416, %v419
    %vm421 = vweird.f32 %v415
    %vm422 = vweird.f32 %v416
    %vm423 = vmor %vm421, %vm422
    %v424 = vsel %vm423, %v416, %v420
    %v425 = vand.u32 2147483647, %v415
    %vm426 = vcmp.eq.f32.partialorder %v425, 8.507059e+37
    %v427 = vand.u32 %v415, 2147483648
    %v428 = vor.u32 1.1754944e-38, %v427
    %v429 = vsel %vm426, %v428, %v424
    %v430 = vmul.f32 1.0, %v429
    %v431 = vtanh.pop %v343
    %v432 = vld [vmem:[#allocation5] sm:$0x3]
    %434 = vrot.lane.b32.xlu0 %v432, 32
    %v435 = vpop.permute.xlu0 %434
    %v437 = vmul.f32 %v430, %v435
    %439 = vrot.lane.b32.xlu0 %v431, 32
    %v440 = vpop.permute.xlu0 %439
    %v442 = vmul.f32 %v430, %v440
    %444 = vrot.lane.b32.xlu0 %v442, 32
    %v445 = vpop.permute.xlu0 %444
    %v447 = vadd.f32 %v437, %v445
    %v448 = vtanh.pop %v447
    %450 = vrot.lane.b32.xlu0 %v448, 32
    %v451 = vpop.permute.xlu0 %450
    %v453 = vmul.f32 %v430, %v451
    %455 = vst [vmem:[#allocation1] ss:$4 sm:$0xff] %v453
    %v456 = vld.sshfl [vmem:[#allocation1] sm:$0xff pattern:$0x73625140]
    %457 = vrot.lane.b32.xlu0 %v456, 64
    %v458 = vpop.permute.xlu0 %457
    %460 = vst.msk [vmem:[#allocation3] sm:$0x3] %vm210, %v458
    %462 = vst [vmem:[#allocation1] ss:$4 sm:$0xff] %v447
    %v463 = vld.sshfl [vmem:[#allocation1] sm:$0xff pattern:$0x73625140]
    %464 = vrot.lane.b32.xlu0 %v463, 96
    %v465 = vpop.permute.xlu0 %464
    %467 = vst.msk [vmem:[#allocation5] sm:$0x3] %vm210, %v465
    %v468 = vpack.c.bf16 %v453, %v453
    %v470 = vrot.slane %v468, 3
    %v473 = vsel %vm222, %v468, %v470
    %475 = vrot.lane.b32.xlu0 %v473, 64
    %v476 = vpop.permute.xlu0 %475
    %s478 = scalar_lea.vmem [#allocation13], 6
    %479 = vst.msk [vmem:[%s478] sm:$0x1] %vm230, %v476
    %s480 = scalar_lea.vmem [#allocation6], 2
    %v481 = vld [vmem:[%s480] sm:$0x1]
    %v482 = vunpack.c.l.bf16 %v481
    %v483 = vld [vmem:[#allocation2] sm:$0x3]
    %v484 = vpack.c.bf16 %v483, %v483
    %v486 = vsel %vm110, %v484, 0
    %488 = vmatpush.bf16.msra.mxu0 0
    %489 = vmatpush.bf16.msra.mxu0 0
    %490 = vmatpush.bf16.msra.mxu0 0
    %491 = vmatpush.bf16.msra.mxu0 0
    %492 = vmatpush.bf16.msra.mxu0 0
    %493 = vmatpush.bf16.msra.mxu0 0
    %494 = vmatpush.bf16.msra.mxu0 %v107
    %495 = vmatpush.bf16.msra.mxu0 %v106
    %496 = vmatmul.bf16.gmra.mxu0 %v486
    %v497 = vpop.f32.mrf.mxu0
    %v498 = vadd.f32 0.0, %v497
    %v499 = vpop.f32.mrf.mxu0
    %500 = vdwg.mxu0
    %v501 = vadd.f32 %v482, %v498
    %s502 = scalar_lea.vmem [#allocation9], 5
    %v503 = vld [vmem:[%s502] sm:$0x1]
    %v504 = vunpack.c.l.bf16 %v503
    %v505 = vld [vmem:[#allocation3] sm:$0x3]
    %v506 = vpack.c.bf16 %v505, %v505
    %v508 = vsel %vm110, %v506, 0
    %510 = vmatpush.bf16.msra.mxu0 0
    %511 = vmatpush.bf16.msra.mxu0 0
    %512 = vmatpush.bf16.msra.mxu0 0
    %513 = vmatpush.bf16.msra.mxu0 0
    %514 = vmatpush.bf16.msra.mxu0 0
    %515 = vmatpush.bf16.msra.mxu0 0
    %516 = vmatpush.bf16.msra.mxu0 %v142
    %517 = vmatpush.bf16.msra.mxu0 %v141
    %518 = vmatmul.bf16.gmra.mxu0 %v508
    %v519 = vpop.f32.mrf.mxu0
    %v520 = vadd.f32 0.0, %v519
    %v521 = vpop.f32.mrf.mxu0
    %522 = vdwg.mxu0
    %v523 = vadd.f32 %v504, %v520
    %v524 = vxor.u32 %v501, 2147483648
    %v525 = vmul.f32 %v524, 1.442695
    %v526 = vpow.pop %v525
    %v527 = vadd.f32 %v526, 1.0
    %v528 = vrcp.pop %v527
    %v529 = vmul.f32 %v527, %v528
    %v530 = vsub.f32 1.0, %v529
    %v531 = vmul.f32 %v528, %v530
    %v532 = vadd.f32 %v528, %v531
    %vm533 = vweird.f32 %v527
    %vm534 = vweird.f32 %v528
    %vm535 = vmor %vm533, %vm534
    %v536 = vsel %vm535, %v528, %v532
    %v537 = vand.u32 2147483647, %v527
    %vm538 = vcmp.eq.f32.partialorder %v537, 8.507059e+37
    %v539 = vand.u32 %v527, 2147483648
    %v540 = vor.u32 1.1754944e-38, %v539
    %v541 = vsel %vm538, %v540, %v536
    %v542 = vmul.f32 1.0, %v541
    %v543 = vtanh.pop %v501
    %v544 = vld [vmem:[#allocation4] sm:$0x3]
    %546 = vrot.lane.b32.xlu0 %v544, 32
    %v547 = vpop.permute.xlu0 %546
    %v549 = vmul.f32 %v542, %v547
    %551 = vrot.lane.b32.xlu0 %v543, 32
    %v552 = vpop.permute.xlu0 %551
    %v554 = vmul.f32 %v542, %v552
    %556 = vrot.lane.b32.xlu0 %v554, 32
    %v557 = vpop.permute.xlu0 %556
    %v559 = vadd.f32 %v549, %v557
    %v560 = vtanh.pop %v559
    %562 = vrot.lane.b32.xlu0 %v560, 32
    %v563 = vpop.permute.xlu0 %562
    %v565 = vmul.f32 %v542, %v563
    %567 = vst [vmem:[#allocation1] ss:$4 sm:$0xff] %v565
    %v568 = vld.sshfl [vmem:[#allocation1] sm:$0xff pattern:$0x73625140]
    %569 = vrot.lane.b32.xlu0 %v568, 64
    %v570 = vpop.permute.xlu0 %569
    %572 = vst.msk [vmem:[#allocation2] sm:$0x3] %vm210, %v570
    %574 = vst [vmem:[#allocation1] ss:$4 sm:$0xff] %v559
    %v575 = vld.sshfl [vmem:[#allocation1] sm:$0xff pattern:$0x73625140]
    %576 = vrot.lane.b32.xlu0 %v575, 96
    %v577 = vpop.permute.xlu0 %576
    %579 = vst.msk [vmem:[#allocation4] sm:$0x3] %vm210, %v577
    %v580 = vpack.c.bf16 %v565, %v565
    %v582 = vrot.slane %v580, 3
    %v585 = vsel %vm222, %v580, %v582
    %587 = vrot.lane.b32.xlu0 %v585, 64
    %v588 = vpop.permute.xlu0 %587
    %s590 = scalar_lea.vmem [#allocation12], 2
    %591 = vst.msk [vmem:[%s590] sm:$0x1] %vm230, %v588
    %v592 = vxor.u32 %v523, 2147483648
    %v593 = vmul.f32 %v592, 1.442695
    %v594 = vpow.pop %v593
    %v595 = vadd.f32 %v594, 1.0
    %v596 = vrcp.pop %v595
    %v597 = vmul.f32 %v595, %v596
    %v598 = vsub.f32 1.0, %v597
    %v599 = vmul.f32 %v596, %v598
    %v600 = vadd.f32 %v596, %v599
    %vm601 = vweird.f32 %v595
    %vm602 = vweird.f32 %v596
    %vm603 = vmor %vm601, %vm602
    %v604 = vsel %vm603, %v596, %v600
    %v605 = vand.u32 2147483647, %v595
    %vm606 = vcmp.eq.f32.partialorder %v605, 8.507059e+37
    %v607 = vand.u32 %v595, 2147483648
    %v608 = vor.u32 1.1754944e-38, %v607
    %v609 = vsel %vm606, %v608, %v604
    %v610 = vmul.f32 1.0, %v609
    %v611 = vtanh.pop %v523
    %v612 = vld [vmem:[#allocation5] sm:$0x3]
    %614 = vrot.lane.b32.xlu0 %v612, 32
    %v615 = vpop.permute.xlu0 %614
    %v617 = vmul.f32 %v610, %v615
    %619 = vrot.lane.b32.xlu0 %v611, 32
    %v620 = vpop.permute.xlu0 %619
    %v622 = vmul.f32 %v610, %v620
    %624 = vrot.lane.b32.xlu0 %v622, 32
    %v625 = vpop.permute.xlu0 %624
    %v627 = vadd.f32 %v617, %v625
    %v628 = vtanh.pop %v627
    %630 = vrot.lane.b32.xlu0 %v628, 32
    %v631 = vpop.permute.xlu0 %630
    %v633 = vmul.f32 %v610, %v631
    %635 = vst [vmem:[#allocation1] ss:$4 sm:$0xff] %v633
    %v636 = vld.sshfl [vmem:[#allocation1] sm:$0xff pattern:$0x73625140]
    %637 = vrot.lane.b32.xlu0 %v636, 64
    %v638 = vpop.permute.xlu0 %637
    %640 = vst.msk [vmem:[#allocation3] sm:$0x3] %vm210, %v638
    %642 = vst [vmem:[#allocation1] ss:$4 sm:$0xff] %v627
    %v643 = vld.sshfl [vmem:[#allocation1] sm:$0xff pattern:$0x73625140]
    %644 = vrot.lane.b32.xlu0 %v643, 96
    %v645 = vpop.permute.xlu0 %644
    %647 = vst.msk [vmem:[#allocation5] sm:$0x3] %vm210, %v645
    %v648 = vpack.c.bf16 %v633, %v633
    %v650 = vrot.slane %v648, 3
    %v653 = vsel %vm222, %v648, %v650
    %655 = vrot.lane.b32.xlu0 %v653, 64
    %v656 = vpop.permute.xlu0 %655
    %s658 = scalar_lea.vmem [#allocation13], 5
    %659 = vst.msk [vmem:[%s658] sm:$0x1] %vm230, %v656
    %s660 = scalar_lea.vmem [#allocation6], 3
    %v661 = vld [vmem:[%s660] sm:$0x1]
    %v662 = vunpack.c.l.bf16 %v661
    %v663 = vld [vmem:[#allocation2] sm:$0x3]
    %v664 = vpack.c.bf16 %v663, %v663
    %v666 = vsel %vm110, %v664, 0
    %668 = vmatpush.bf16.msra.mxu0 0
    %669 = vmatpush.bf16.msra.mxu0 0
    %670 = vmatpush.bf16.msra.mxu0 0
    %671 = vmatpush.bf16.msra.mxu0 0
    %672 = vmatpush.bf16.msra.mxu0 0
    %673 = vmatpush.bf16.msra.mxu0 0
    %674 = vmatpush.bf16.msra.mxu0 %v107
    %675 = vmatpush.bf16.msra.mxu0 %v106
    %676 = vmatmul.bf16.gmra.mxu0 %v666
    %v677 = vpop.f32.mrf.mxu0
    %v678 = vadd.f32 0.0, %v677
    %v679 = vpop.f32.mrf.mxu0
    %680 = vdwg.mxu0
    %v681 = vadd.f32 %v662, %v678
    %s682 = scalar_lea.vmem [#allocation9], 4
    %v683 = vld [vmem:[%s682] sm:$0x1]
    %v684 = vunpack.c.l.bf16 %v683
    %v685 = vld [vmem:[#allocation3] sm:$0x3]
    %v686 = vpack.c.bf16 %v685, %v685
    %v688 = vsel %vm110, %v686, 0
    %690 = vmatpush.bf16.msra.mxu0 0
    %691 = vmatpush.bf16.msra.mxu0 0
    %692 = vmatpush.bf16.msra.mxu0 0
    %693 = vmatpush.bf16.msra.mxu0 0
    %694 = vmatpush.bf16.msra.mxu0 0
    %695 = vmatpush.bf16.msra.mxu0 0
    %696 = vmatpush.bf16.msra.mxu0 %v142
    %697 = vmatpush.bf16.msra.mxu0 %v141
    %698 = vmatmul.bf16.gmra.mxu0 %v688
    %v699 = vpop.f32.mrf.mxu0
    %v700 = vadd.f32 0.0, %v699
    %v701 = vpop.f32.mrf.mxu0
    %702 = vdwg.mxu0
    %v703 = vadd.f32 %v684, %v700
    %v704 = vxor.u32 %v681, 2147483648
    %v705 = vmul.f32 %v704, 1.442695
    %v706 = vpow.pop %v705
    %v707 = vadd.f32 %v706, 1.0
    %v708 = vrcp.pop %v707
    %v709 = vmul.f32 %v707, %v708
    %v710 = vsub.f32 1.0, %v709
    %v711 = vmul.f32 %v708, %v710
    %v712 = vadd.f32 %v708, %v711
    %vm713 = vweird.f32 %v707
    %vm714 = vweird.f32 %v708
    %vm715 = vmor %vm713, %vm714
    %v716 = vsel %vm715, %v708, %v712
    %v717 = vand.u32 2147483647, %v707
    %vm718 = vcmp.eq.f32.partialorder %v717, 8.507059e+37
    %v719 = vand.u32 %v707, 2147483648
    %v720 = vor.u32 1.1754944e-38, %v719
    %v721 = vsel %vm718, %v720, %v716
    %v722 = vmul.f32 1.0, %v721
    %v723 = vtanh.pop %v681
    %v724 = vld [vmem:[#allocation4] sm:$0x3]
    %726 = vrot.lane.b32.xlu0 %v724, 32
    %v727 = vpop.permute.xlu0 %726
    %v729 = vmul.f32 %v722, %v727
    %731 = vrot.lane.b32.xlu0 %v723, 32
    %v732 = vpop.permute.xlu0 %731
    %v734 = vmul.f32 %v722, %v732
    %736 = vrot.lane.b32.xlu0 %v734, 32
    %v737 = vpop.permute.xlu0 %736
    %v739 = vadd.f32 %v729, %v737
    %v740 = vtanh.pop %v739
    %742 = vrot.lane.b32.xlu0 %v740, 32
    %v743 = vpop.permute.xlu0 %742
    %v745 = vmul.f32 %v722, %v743
    %747 = vst [vmem:[#allocation1] ss:$4 sm:$0xff] %v745
    %v748 = vld.sshfl [vmem:[#allocation1] sm:$0xff pattern:$0x73625140]
    %749 = vrot.lane.b32.xlu0 %v748, 64
    %v750 = vpop.permute.xlu0 %749
    %752 = vst.msk [vmem:[#allocation2] sm:$0x3] %vm210, %v750
    %754 = vst [vmem:[#allocation1] ss:$4 sm:$0xff] %v739
    %v755 = vld.sshfl [vmem:[#allocation1] sm:$0xff pattern:$0x73625140]
    %756 = vrot.lane.b32.xlu0 %v755, 96
    %v757 = vpop.permute.xlu0 %756
    %759 = vst.msk [vmem:[#allocation4] sm:$0x3] %vm210, %v757
    %v760 = vpack.c.bf16 %v745, %v745
    %v762 = vrot.slane %v760, 3
    %v765 = vsel %vm222, %v760, %v762
    %767 = vrot.lane.b32.xlu0 %v765, 64
    %v768 = vpop.permute.xlu0 %767
    %s770 = scalar_lea.vmem [#allocation12], 3
    %771 = vst.msk [vmem:[%s770] sm:$0x1] %vm230, %v768
    %v772 = vxor.u32 %v703, 2147483648
    %v773 = vmul.f32 %v772, 1.442695
    %v774 = vpow.pop %v773
    %v775 = vadd.f32 %v774, 1.0
    %v776 = vrcp.pop %v775
    %v777 = vmul.f32 %v775, %v776
    %v778 = vsub.f32 1.0, %v777
    %v779 = vmul.f32 %v776, %v778
    %v780 = vadd.f32 %v776, %v779
    %vm781 = vweird.f32 %v775
    %vm782 = vweird.f32 %v776
    %vm783 = vmor %vm781, %vm782
    %v784 = vsel %vm783, %v776, %v780
    %v785 = vand.u32 2147483647, %v775
    %vm786 = vcmp.eq.f32.partialorder %v785, 8.507059e+37
    %v787 = vand.u32 %v775, 2147483648
    %v788 = vor.u32 1.1754944e-38, %v787
    %v789 = vsel %vm786, %v788, %v784
    %v790 = vmul.f32 1.0, %v789
    %v791 = vtanh.pop %v703
    %v792 = vld [vmem:[#allocation5] sm:$0x3]
    %794 = vrot.lane.b32.xlu0 %v792, 32
    %v795 = vpop.permute.xlu0 %794
    %v797 = vmul.f32 %v790, %v795
    %799 = vrot.lane.b32.xlu0 %v791, 32
    %v800 = vpop.permute.xlu0 %799
    %v802 = vmul.f32 %v790, %v800
    %804 = vrot.lane.b32.xlu0 %v802, 32
    %v805 = vpop.permute.xlu0 %804
    %v807 = vadd.f32 %v797, %v805
    %v808 = vtanh.pop %v807
    %810 = vrot.lane.b32.xlu0 %v808, 32
    %v811 = vpop.permute.xlu0 %810
    %v813 = vmul.f32 %v790, %v811
    %815 = vst [vmem:[#allocation1] ss:$4 sm:$0xff] %v813
    %v816 = vld.sshfl [vmem:[#allocation1] sm:$0xff pattern:$0x73625140]
    %817 = vrot.lane.b32.xlu0 %v816, 64
    %v818 = vpop.permute.xlu0 %817
    %820 = vst.msk [vmem:[#allocation3] sm:$0x3] %vm210, %v818
    %822 = vst [vmem:[#allocation1] ss:$4 sm:$0xff] %v807
    %v823 = vld.sshfl [vmem:[#allocation1] sm:$0xff pattern:$0x73625140]
    %824 = vrot.lane.b32.xlu0 %v823, 96
    %v825 = vpop.permute.xlu0 %824
    %827 = vst.msk [vmem:[#allocation5] sm:$0x3] %vm210, %v825
    %v828 = vpack.c.bf16 %v813, %v813
    %v830 = vrot.slane %v828, 3
    %v833 = vsel %vm222, %v828, %v830
    %835 = vrot.lane.b32.xlu0 %v833, 64
    %v836 = vpop.permute.xlu0 %835
    %s838 = scalar_lea.vmem [#allocation13], 4
    %839 = vst.msk [vmem:[%s838] sm:$0x1] %vm230, %v836
    %s840 = scalar_lea.vmem [#allocation6], 4
    %v841 = vld [vmem:[%s840] sm:$0x1]
    %v842 = vunpack.c.l.bf16 %v841
    %v843 = vld [vmem:[#allocation2] sm:$0x3]
    %v844 = vpack.c.bf16 %v843, %v843
    %v846 = vsel %vm110, %v844, 0
    %848 = vmatpush.bf16.msra.mxu0 0
    %849 = vmatpush.bf16.msra.mxu0 0
    %850 = vmatpush.bf16.msra.mxu0 0
    %851 = vmatpush.bf16.msra.mxu0 0
    %852 = vmatpush.bf16.msra.mxu0 0
    %853 = vmatpush.bf16.msra.mxu0 0
    %854 = vmatpush.bf16.msra.mxu0 %v107
    %855 = vmatpush.bf16.msra.mxu0 %v106
    %856 = vmatmul.bf16.gmra.mxu0 %v846
    %v857 = vpop.f32.mrf.mxu0
    %v858 = vadd.f32 0.0, %v857
    %v859 = vpop.f32.mrf.mxu0
    %860 = vdwg.mxu0
    %v861 = vadd.f32 %v842, %v858
    %s862 = scalar_lea.vmem [#allocation9], 3
    %v863 = vld [vmem:[%s862] sm:$0x1]
    %v864 = vunpack.c.l.bf16 %v863
    %v865 = vld [vmem:[#allocation3] sm:$0x3]
    %v866 = vpack.c.bf16 %v865, %v865
    %v868 = vsel %vm110, %v866, 0
    %870 = vmatpush.bf16.msra.mxu0 0
    %871 = vmatpush.bf16.msra.mxu0 0
    %872 = vmatpush.bf16.msra.mxu0 0
    %873 = vmatpush.bf16.msra.mxu0 0
    %874 = vmatpush.bf16.msra.mxu0 0
    %875 = vmatpush.bf16.msra.mxu0 0
    %876 = vmatpush.bf16.msra.mxu0 %v142
    %877 = vmatpush.bf16.msra.mxu0 %v141
    %878 = vmatmul.bf16.gmra.mxu0 %v868
    %v879 = vpop.f32.mrf.mxu0
    %v880 = vadd.f32 0.0, %v879
    %v881 = vpop.f32.mrf.mxu0
    %882 = vdwg.mxu0
    %v883 = vadd.f32 %v864, %v880
    %v884 = vxor.u32 %v861, 2147483648
    %v885 = vmul.f32 %v884, 1.442695
    %v886 = vpow.pop %v885
    %v887 = vadd.f32 %v886, 1.0
    %v888 = vrcp.pop %v887
    %v889 = vmul.f32 %v887, %v888
    %v890 = vsub.f32 1.0, %v889
    %v891 = vmul.f32 %v888, %v890
    %v892 = vadd.f32 %v888, %v891
    %vm893 = vweird.f32 %v887
    %vm894 = vweird.f32 %v888
    %vm895 = vmor %vm893, %vm894
    %v896 = vsel %vm895, %v888, %v892
    %v897 = vand.u32 2147483647, %v887
    %vm898 = vcmp.eq.f32.partialorder %v897, 8.507059e+37
    %v899 = vand.u32 %v887, 2147483648
    %v900 = vor.u32 1.1754944e-38, %v899
    %v901 = vsel %vm898, %v900, %v896
    %v902 = vmul.f32 1.0, %v901
    %v903 = vtanh.pop %v861
    %v904 = vld [vmem:[#allocation4] sm:$0x3]
    %906 = vrot.lane.b32.xlu0 %v904, 32
    %v907 = vpop.permute.xlu0 %906
    %v909 = vmul.f32 %v902, %v907
    %911 = vrot.lane.b32.xlu0 %v903, 32
    %v912 = vpop.permute.xlu0 %911
    %v914 = vmul.f32 %v902, %v912
    %916 = vrot.lane.b32.xlu0 %v914, 32
    %v917 = vpop.permute.xlu0 %916
    %v919 = vadd.f32 %v909, %v917
    %v920 = vtanh.pop %v919
    %922 = vrot.lane.b32.xlu0 %v920, 32
    %v923 = vpop.permute.xlu0 %922
    %v925 = vmul.f32 %v902, %v923
    %927 = vst [vmem:[#allocation1] ss:$4 sm:$0xff] %v925
    %v928 = vld.sshfl [vmem:[#allocation1] sm:$0xff pattern:$0x73625140]
    %929 = vrot.lane.b32.xlu0 %v928, 64
    %v930 = vpop.permute.xlu0 %929
    %932 = vst.msk [vmem:[#allocation2] sm:$0x3] %vm210, %v930
    %934 = vst [vmem:[#allocation1] ss:$4 sm:$0xff] %v919
    %v935 = vld.sshfl [vmem:[#allocation1] sm:$0xff pattern:$0x73625140]
    %936 = vrot.lane.b32.xlu0 %v935, 96
    %v937 = vpop.permute.xlu0 %936
    %939 = vst.msk [vmem:[#allocation4] sm:$0x3] %vm210, %v937
    %v940 = vpack.c.bf16 %v925, %v925
    %v942 = vrot.slane %v940, 3
    %v945 = vsel %vm222, %v940, %v942
    %947 = vrot.lane.b32.xlu0 %v945, 64
    %v948 = vpop.permute.xlu0 %947
    %s950 = scalar_lea.vmem [#allocation12], 4
    %951 = vst.msk [vmem:[%s950] sm:$0x1] %vm230, %v948
    %v952 = vxor.u32 %v883, 2147483648
    %v953 = vmul.f32 %v952, 1.442695
    %v954 = vpow.pop %v953
    %v955 = vadd.f32 %v954, 1.0
    %v956 = vrcp.pop %v955
    %v957 = vmul.f32 %v955, %v956
    %v958 = vsub.f32 1.0, %v957
    %v959 = vmul.f32 %v956, %v958
    %v960 = vadd.f32 %v956, %v959
    %vm961 = vweird.f32 %v955
    %vm962 = vweird.f32 %v956
    %vm963 = vmor %vm961, %vm962
    %v964 = vsel %vm963, %v956, %v960
    %v965 = vand.u32 2147483647, %v955
    %vm966 = vcmp.eq.f32.partialorder %v965, 8.507059e+37
    %v967 = vand.u32 %v955, 2147483648
    %v968 = vor.u32 1.1754944e-38, %v967
    %v969 = vsel %vm966, %v968, %v964
    %v970 = vmul.f32 1.0, %v969
    %v971 = vtanh.pop %v883
    %v972 = vld [vmem:[#allocation5] sm:$0x3]
    %974 = vrot.lane.b32.xlu0 %v972, 32
    %v975 = vpop.permute.xlu0 %974
    %v977 = vmul.f32 %v970, %v975
    %979 = vrot.lane.b32.xlu0 %v971, 32
    %v980 = vpop.permute.xlu0 %979
    %v982 = vmul.f32 %v970, %v980
    %984 = vrot.lane.b32.xlu0 %v982, 32
    %v985 = vpop.permute.xlu0 %984
    %v987 = vadd.f32 %v977, %v985
    %v988 = vtanh.pop %v987
    %990 = vrot.lane.b32.xlu0 %v988, 32
    %v991 = vpop.permute.xlu0 %990
    %v993 = vmul.f32 %v970, %v991
    %995 = vst [vmem:[#allocation1] ss:$4 sm:$0xff] %v993
    %v996 = vld.sshfl [vmem:[#allocation1] sm:$0xff pattern:$0x73625140]
    %997 = vrot.lane.b32.xlu0 %v996, 64
    %v998 = vpop.permute.xlu0 %997
    %1000 = vst.msk [vmem:[#allocation3] sm:$0x3] %vm210, %v998
    %1002 = vst [vmem:[#allocation1] ss:$4 sm:$0xff] %v987
    %v1003 = vld.sshfl [vmem:[#allocation1] sm:$0xff pattern:$0x73625140]
    %1004 = vrot.lane.b32.xlu0 %v1003, 96
    %v1005 = vpop.permute.xlu0 %1004
    %1007 = vst.msk [vmem:[#allocation5] sm:$0x3] %vm210, %v1005
    %v1008 = vpack.c.bf16 %v993, %v993
    %v1010 = vrot.slane %v1008, 3
    %v1013 = vsel %vm222, %v1008, %v1010
    %1015 = vrot.lane.b32.xlu0 %v1013, 64
    %v1016 = vpop.permute.xlu0 %1015
    %s1018 = scalar_lea.vmem [#allocation13], 3
    %1019 = vst.msk [vmem:[%s1018] sm:$0x1] %vm230, %v1016
    %s1020 = scalar_lea.vmem [#allocation6], 5
    %v1021 = vld [vmem:[%s1020] sm:$0x1]
    %v1022 = vunpack.c.l.bf16 %v1021
    %v1023 = vld [vmem:[#allocation2] sm:$0x3]
    %v1024 = vpack.c.bf16 %v1023, %v1023
    %v1026 = vsel %vm110, %v1024, 0
    %1028 = vmatpush.bf16.msra.mxu0 0
    %1029 = vmatpush.bf16.msra.mxu0 0
    %1030 = vmatpush.bf16.msra.mxu0 0
    %1031 = vmatpush.bf16.msra.mxu0 0
    %1032 = vmatpush.bf16.msra.mxu0 0
    %1033 = vmatpush.bf16.msra.mxu0 0
    %1034 = vmatpush.bf16.msra.mxu0 %v107
    %1035 = vmatpush.bf16.msra.mxu0 %v106
    %1036 = vmatmul.bf16.gmra.mxu0 %v1026
    %v1037 = vpop.f32.mrf.mxu0
    %v1038 = vadd.f32 0.0, %v1037
    %v1039 = vpop.f32.mrf.mxu0
    %1040 = vdwg.mxu0
    %v1041 = vadd.f32 %v1022, %v1038
    %s1042 = scalar_lea.vmem [#allocation9], 2
    %v1043 = vld [vmem:[%s1042] sm:$0x1]
    %v1044 = vunpack.c.l.bf16 %v1043
    %v1045 = vld [vmem:[#allocation3] sm:$0x3]
    %v1046 = vpack.c.bf16 %v1045, %v1045
    %v1048 = vsel %vm110, %v1046, 0
    %1050 = vmatpush.bf16.msra.mxu0 0
    %1051 = vmatpush.bf16.msra.mxu0 0
    %1052 = vmatpush.bf16.msra.mxu0 0
    %1053 = vmatpush.bf16.msra.mxu0 0
    %1054 = vmatpush.bf16.msra.mxu0 0
    %1055 = vmatpush.bf16.msra.mxu0 0
    %1056 = vmatpush.bf16.msra.mxu0 %v142
    %1057 = vmatpush.bf16.msra.mxu0 %v141
    %1058 = vmatmul.bf16.gmra.mxu0 %v1048
    %v1059 = vpop.f32.mrf.mxu0
    %v1060 = vadd.f32 0.0, %v1059
    %v1061 = vpop.f32.mrf.mxu0
    %1062 = vdwg.mxu0
    %v1063 = vadd.f32 %v1044, %v1060
    %v1064 = vxor.u32 %v1041, 2147483648
    %v1065 = vmul.f32 %v1064, 1.442695
    %v1066 = vpow.pop %v1065
    %v1067 = vadd.f32 %v1066, 1.0
    %v1068 = vrcp.pop %v1067
    %v1069 = vmul.f32 %v1067, %v1068
    %v1070 = vsub.f32 1.0, %v1069
    %v1071 = vmul.f32 %v1068, %v1070
    %v1072 = vadd.f32 %v1068, %v1071
    %vm1073 = vweird.f32 %v1067
    %vm1074 = vweird.f32 %v1068
    %vm1075 = vmor %vm1073, %vm1074
    %v1076 = vsel %vm1075, %v1068, %v1072
    %v1077 = vand.u32 2147483647, %v1067
    %vm1078 = vcmp.eq.f32.partialorder %v1077, 8.507059e+37
    %v1079 = vand.u32 %v1067, 2147483648
    %v1080 = vor.u32 1.1754944e-38, %v1079
    %v1081 = vsel %vm1078, %v1080, %v1076
    %v1082 = vmul.f32 1.0, %v1081
    %v1083 = vtanh.pop %v1041
    %v1084 = vld [vmem:[#allocation4] sm:$0x3]
    %1086 = vrot.lane.b32.xlu0 %v1084, 32
    %v1087 = vpop.permute.xlu0 %1086
    %v1089 = vmul.f32 %v1082, %v1087
    %1091 = vrot.lane.b32.xlu0 %v1083, 32
    %v1092 = vpop.permute.xlu0 %1091
    %v1094 = vmul.f32 %v1082, %v1092
    %1096 = vrot.lane.b32.xlu0 %v1094, 32
    %v1097 = vpop.permute.xlu0 %1096
    %v1099 = vadd.f32 %v1089, %v1097
    %v1100 = vtanh.pop %v1099
    %1102 = vrot.lane.b32.xlu0 %v1100, 32
    %v1103 = vpop.permute.xlu0 %1102
    %v1105 = vmul.f32 %v1082, %v1103
    %1107 = vst [vmem:[#allocation1] ss:$4 sm:$0xff] %v1105
    %v1108 = vld.sshfl [vmem:[#allocation1] sm:$0xff pattern:$0x73625140]
    %1109 = vrot.lane.b32.xlu0 %v1108, 64
    %v1110 = vpop.permute.xlu0 %1109
    %1112 = vst.msk [vmem:[#allocation2] sm:$0x3] %vm210, %v1110
    %1114 = vst [vmem:[#allocation1] ss:$4 sm:$0xff] %v1099
    %v1115 = vld.sshfl [vmem:[#allocation1] sm:$0xff pattern:$0x73625140]
    %1116 = vrot.lane.b32.xlu0 %v1115, 96
    %v1117 = vpop.permute.xlu0 %1116
    %1119 = vst.msk [vmem:[#allocation4] sm:$0x3] %vm210, %v1117
    %v1120 = vpack.c.bf16 %v1105, %v1105
    %v1122 = vrot.slane %v1120, 3
    %v1125 = vsel %vm222, %v1120, %v1122
    %1127 = vrot.lane.b32.xlu0 %v1125, 64
    %v1128 = vpop.permute.xlu0 %1127
    %s1130 = scalar_lea.vmem [#allocation12], 5
    %1131 = vst.msk [vmem:[%s1130] sm:$0x1] %vm230, %v1128
    %v1132 = vxor.u32 %v1063, 2147483648
    %v1133 = vmul.f32 %v1132, 1.442695
    %v1134 = vpow.pop %v1133
    %v1135 = vadd.f32 %v1134, 1.0
    %v1136 = vrcp.pop %v1135
    %v1137 = vmul.f32 %v1135, %v1136
    %v1138 = vsub.f32 1.0, %v1137
    %v1139 = vmul.f32 %v1136, %v1138
    %v1140 = vadd.f32 %v1136, %v1139
    %vm1141 = vweird.f32 %v1135
    %vm1142 = vweird.f32 %v1136
    %vm1143 = vmor %vm1141, %vm1142
    %v1144 = vsel %vm1143, %v1136, %v1140
    %v1145 = vand.u32 2147483647, %v1135
    %vm1146 = vcmp.eq.f32.partialorder %v1145, 8.507059e+37
    %v1147 = vand.u32 %v1135, 2147483648
    %v1148 = vor.u32 1.1754944e-38, %v1147
    %v1149 = vsel %vm1146, %v1148, %v1144
    %v1150 = vmul.f32 1.0, %v1149
    %v1151 = vtanh.pop %v1063
    %v1152 = vld [vmem:[#allocation5] sm:$0x3]
    %1154 = vrot.lane.b32.xlu0 %v1152, 32
    %v1155 = vpop.permute.xlu0 %1154
    %v1157 = vmul.f32 %v1150, %v1155
    %1159 = vrot.lane.b32.xlu0 %v1151, 32
    %v1160 = vpop.permute.xlu0 %1159
    %v1162 = vmul.f32 %v1150, %v1160
    %1164 = vrot.lane.b32.xlu0 %v1162, 32
    %v1165 = vpop.permute.xlu0 %1164
    %v1167 = vadd.f32 %v1157, %v1165
    %v1168 = vtanh.pop %v1167
    %1170 = vrot.lane.b32.xlu0 %v1168, 32
    %v1171 = vpop.permute.xlu0 %1170
    %v1173 = vmul.f32 %v1150, %v1171
    %1175 = vst [vmem:[#allocation1] ss:$4 sm:$0xff] %v1173
    %v1176 = vld.sshfl [vmem:[#allocation1] sm:$0xff pattern:$0x73625140]
    %1177 = vrot.lane.b32.xlu0 %v1176, 64
    %v1178 = vpop.permute.xlu0 %1177
    %1180 = vst.msk [vmem:[#allocation3] sm:$0x3] %vm210, %v1178
    %1182 = vst [vmem:[#allocation1] ss:$4 sm:$0xff] %v1167
    %v1183 = vld.sshfl [vmem:[#allocation1] sm:$0xff pattern:$0x73625140]
    %1184 = vrot.lane.b32.xlu0 %v1183, 96
    %v1185 = vpop.permute.xlu0 %1184
    %1187 = vst.msk [vmem:[#allocation5] sm:$0x3] %vm210, %v1185
    %v1188 = vpack.c.bf16 %v1173, %v1173
    %v1190 = vrot.slane %v1188, 3
    %v1193 = vsel %vm222, %v1188, %v1190
    %1195 = vrot.lane.b32.xlu0 %v1193, 64
    %v1196 = vpop.permute.xlu0 %1195
    %s1198 = scalar_lea.vmem [#allocation13], 2
    %1199 = vst.msk [vmem:[%s1198] sm:$0x1] %vm230, %v1196
    %s1200 = scalar_lea.vmem [#allocation6], 6
    %v1201 = vld [vmem:[%s1200] sm:$0x1]
    %v1202 = vunpack.c.l.bf16 %v1201
    %v1203 = vld [vmem:[#allocation2] sm:$0x3]
    %v1204 = vpack.c.bf16 %v1203, %v1203
    %v1206 = vsel %vm110, %v1204, 0
    %1208 = vmatpush.bf16.msra.mxu0 0
    %1209 = vmatpush.bf16.msra.mxu0 0
    %1210 = vmatpush.bf16.msra.mxu0 0
    %1211 = vmatpush.bf16.msra.mxu0 0
    %1212 = vmatpush.bf16.msra.mxu0 0
    %1213 = vmatpush.bf16.msra.mxu0 0
    %1214 = vmatpush.bf16.msra.mxu0 %v107
    %1215 = vmatpush.bf16.msra.mxu0 %v106
    %1216 = vmatmul.bf16.gmra.mxu0 %v1206
    %v1217 = vpop.f32.mrf.mxu0
    %v1218 = vadd.f32 0.0, %v1217
    %v1219 = vpop.f32.mrf.mxu0
    %1220 = vdwg.mxu0
    %v1221 = vadd.f32 %v1202, %v1218
    %s1222 = scalar_lea.vmem [#allocation9], 1
    %v1223 = vld [vmem:[%s1222] sm:$0x1]
    %v1224 = vunpack.c.l.bf16 %v1223
    %v1225 = vld [vmem:[#allocation3] sm:$0x3]
    %v1226 = vpack.c.bf16 %v1225, %v1225
    %v1228 = vsel %vm110, %v1226, 0
    %1230 = vmatpush.bf16.msra.mxu0 0
    %1231 = vmatpush.bf16.msra.mxu0 0
    %1232 = vmatpush.bf16.msra.mxu0 0
    %1233 = vmatpush.bf16.msra.mxu0 0
    %1234 = vmatpush.bf16.msra.mxu0 0
    %1235 = vmatpush.bf16.msra.mxu0 0
    %1236 = vmatpush.bf16.msra.mxu0 %v142
    %1237 = vmatpush.bf16.msra.mxu0 %v141
    %1238 = vmatmul.bf16.gmra.mxu0 %v1228
    %v1239 = vpop.f32.mrf.mxu0
    %v1240 = vadd.f32 0.0, %v1239
    %v1241 = vpop.f32.mrf.mxu0
    %1242 = vdwg.mxu0
    %v1243 = vadd.f32 %v1224, %v1240
    %v1244 = vxor.u32 %v1221, 2147483648
    %v1245 = vmul.f32 %v1244, 1.442695
    %v1246 = vpow.pop %v1245
    %v1247 = vadd.f32 %v1246, 1.0
    %v1248 = vrcp.pop %v1247
    %v1249 = vmul.f32 %v1247, %v1248
    %v1250 = vsub.f32 1.0, %v1249
    %v1251 = vmul.f32 %v1248, %v1250
    %v1252 = vadd.f32 %v1248, %v1251
    %vm1253 = vweird.f32 %v1247
    %vm1254 = vweird.f32 %v1248
    %vm1255 = vmor %vm1253, %vm1254
    %v1256 = vsel %vm1255, %v1248, %v1252
    %v1257 = vand.u32 2147483647, %v1247
    %vm1258 = vcmp.eq.f32.partialorder %v1257, 8.507059e+37
    %v1259 = vand.u32 %v1247, 2147483648
    %v1260 = vor.u32 1.1754944e-38, %v1259
    %v1261 = vsel %vm1258, %v1260, %v1256
    %v1262 = vmul.f32 1.0, %v1261
    %v1263 = vtanh.pop %v1221
    %v1264 = vld [vmem:[#allocation4] sm:$0x3]
    %1266 = vrot.lane.b32.xlu0 %v1264, 32
    %v1267 = vpop.permute.xlu0 %1266
    %v1269 = vmul.f32 %v1262, %v1267
    %1271 = vrot.lane.b32.xlu0 %v1263, 32
    %v1272 = vpop.permute.xlu0 %1271
    %v1274 = vmul.f32 %v1262, %v1272
    %1276 = vrot.lane.b32.xlu0 %v1274, 32
    %v1277 = vpop.permute.xlu0 %1276
    %v1279 = vadd.f32 %v1269, %v1277
    %v1280 = vtanh.pop %v1279
    %1282 = vrot.lane.b32.xlu0 %v1280, 32
    %v1283 = vpop.permute.xlu0 %1282
    %v1285 = vmul.f32 %v1262, %v1283
    %1287 = vst [vmem:[#allocation1] ss:$4 sm:$0xff] %v1285
    %v1288 = vld.sshfl [vmem:[#allocation1] sm:$0xff pattern:$0x73625140]
    %1289 = vrot.lane.b32.xlu0 %v1288, 64
    %v1290 = vpop.permute.xlu0 %1289
    %1292 = vst.msk [vmem:[#allocation2] sm:$0x3] %vm210, %v1290
    %1294 = vst [vmem:[#allocation1] ss:$4 sm:$0xff] %v1279
    %v1295 = vld.sshfl [vmem:[#allocation1] sm:$0xff pattern:$0x73625140]
    %1296 = vrot.lane.b32.xlu0 %v1295, 96
    %v1297 = vpop.permute.xlu0 %1296
    %1299 = vst.msk [vmem:[#allocation4] sm:$0x3] %vm210, %v1297
    %v1300 = vpack.c.bf16 %v1285, %v1285
    %v1302 = vrot.slane %v1300, 3
    %v1305 = vsel %vm222, %v1300, %v1302
    %1307 = vrot.lane.b32.xlu0 %v1305, 64
    %v1308 = vpop.permute.xlu0 %1307
    %s1310 = scalar_lea.vmem [#allocation12], 6
    %1311 = vst.msk [vmem:[%s1310] sm:$0x1] %vm230, %v1308
    %v1312 = vxor.u32 %v1243, 2147483648
    %v1313 = vmul.f32 %v1312, 1.442695
    %v1314 = vpow.pop %v1313
    %v1315 = vadd.f32 %v1314, 1.0
    %v1316 = vrcp.pop %v1315
    %v1317 = vmul.f32 %v1315, %v1316
    %v1318 = vsub.f32 1.0, %v1317
    %v1319 = vmul.f32 %v1316, %v1318
    %v1320 = vadd.f32 %v1316, %v1319
    %vm1321 = vweird.f32 %v1315
    %vm1322 = vweird.f32 %v1316
    %vm1323 = vmor %vm1321, %vm1322
    %v1324 = vsel %vm1323, %v1316, %v1320
    %v1325 = vand.u32 2147483647, %v1315
    %vm1326 = vcmp.eq.f32.partialorder %v1325, 8.507059e+37
    %v1327 = vand.u32 %v1315, 2147483648
    %v1328 = vor.u32 1.1754944e-38, %v1327
    %v1329 = vsel %vm1326, %v1328, %v1324
    %v1330 = vmul.f32 1.0, %v1329
    %v1331 = vtanh.pop %v1243
    %v1332 = vld [vmem:[#allocation5] sm:$0x3]
    %1334 = vrot.lane.b32.xlu0 %v1332, 32
    %v1335 = vpop.permute.xlu0 %1334
    %v1337 = vmul.f32 %v1330, %v1335
    %1339 = vrot.lane.b32.xlu0 %v1331, 32
    %v1340 = vpop.permute.xlu0 %1339
    %v1342 = vmul.f32 %v1330, %v1340
    %1344 = vrot.lane.b32.xlu0 %v1342, 32
    %v1345 = vpop.permute.xlu0 %1344
    %v1347 = vadd.f32 %v1337, %v1345
    %v1348 = vtanh.pop %v1347
    %1350 = vrot.lane.b32.xlu0 %v1348, 32
    %v1351 = vpop.permute.xlu0 %1350
    %v1353 = vmul.f32 %v1330, %v1351
    %1355 = vst [vmem:[#allocation1] ss:$4 sm:$0xff] %v1353
    %v1356 = vld.sshfl [vmem:[#allocation1] sm:$0xff pattern:$0x73625140]
    %1357 = vrot.lane.b32.xlu0 %v1356, 64
    %v1358 = vpop.permute.xlu0 %1357
    %1360 = vst.msk [vmem:[#allocation3] sm:$0x3] %vm210, %v1358
    %1362 = vst [vmem:[#allocation1] ss:$4 sm:$0xff] %v1347
    %v1363 = vld.sshfl [vmem:[#allocation1] sm:$0xff pattern:$0x73625140]
    %1364 = vrot.lane.b32.xlu0 %v1363, 96
    %v1365 = vpop.permute.xlu0 %1364
    %1367 = vst.msk [vmem:[#allocation5] sm:$0x3] %vm210, %v1365
    %v1368 = vpack.c.bf16 %v1353, %v1353
    %v1370 = vrot.slane %v1368, 3
    %v1373 = vsel %vm222, %v1368, %v1370
    %1375 = vrot.lane.b32.xlu0 %v1373, 64
    %v1376 = vpop.permute.xlu0 %1375
    %s1378 = scalar_lea.vmem [#allocation13], 1
    %1379 = vst.msk [vmem:[%s1378] sm:$0x1] %vm230, %v1376
    %s1380 = scalar_lea.vmem [#allocation6], 7
    %v1381 = vld [vmem:[%s1380] sm:$0x1]
    %v1382 = vunpack.c.l.bf16 %v1381
    %v1383 = vld [vmem:[#allocation2] sm:$0x3]
    %v1384 = vpack.c.bf16 %v1383, %v1383
    %v1386 = vsel %vm110, %v1384, 0
    %1388 = vmatpush.bf16.msra.mxu0 0
    %1389 = vmatpush.bf16.msra.mxu0 0
    %1390 = vmatpush.bf16.msra.mxu0 0
    %1391 = vmatpush.bf16.msra.mxu0 0
    %1392 = vmatpush.bf16.msra.mxu0 0
    %1393 = vmatpush.bf16.msra.mxu0 0
    %1394 = vmatpush.bf16.msra.mxu0 %v107
    %1395 = vmatpush.bf16.msra.mxu0 %v106
    %1396 = vmatmul.bf16.gmra.mxu0 %v1386
    %v1397 = vpop.f32.mrf.mxu0
    %v1398 = vadd.f32 0.0, %v1397
    %v1399 = vpop.f32.mrf.mxu0
    %1400 = vdwg.mxu0
    %v1401 = vadd.f32 %v1382, %v1398
    %v1402 = vld [vmem:[#allocation9] sm:$0x1]
    %v1403 = vunpack.c.l.bf16 %v1402
    %v1404 = vld [vmem:[#allocation3] sm:$0x3]
    %v1405 = vpack.c.bf16 %v1404, %v1404
    %v1407 = vsel %vm110, %v1405, 0
    %1409 = vmatpush.bf16.msra.mxu0 0
    %1410 = vmatpush.bf16.msra.mxu0 0
    %1411 = vmatpush.bf16.msra.mxu0 0
    %1412 = vmatpush.bf16.msra.mxu0 0
    %1413 = vmatpush.bf16.msra.mxu0 0
    %1414 = vmatpush.bf16.msra.mxu0 0
    %1415 = vmatpush.bf16.msra.mxu0 %v142
    %1416 = vmatpush.bf16.msra.mxu0 %v141
    %1417 = vmatmul.bf16.gmra.mxu0 %v1407
    %v1418 = vpop.f32.mrf.mxu0
    %v1419 = vadd.f32 0.0, %v1418
    %v1420 = vpop.f32.mrf.mxu0
    %1421 = vdwg.mxu0
    %v1422 = vadd.f32 %v1403, %v1419
    %v1423 = vxor.u32 %v1401, 2147483648
    %v1424 = vmul.f32 %v1423, 1.442695
    %v1425 = vpow.pop %v1424
    %v1426 = vadd.f32 %v1425, 1.0
    %v1427 = vrcp.pop %v1426
    %v1428 = vmul.f32 %v1426, %v1427
    %v1429 = vsub.f32 1.0, %v1428
    %v1430 = vmul.f32 %v1427, %v1429
    %v1431 = vadd.f32 %v1427, %v1430
    %vm1432 = vweird.f32 %v1426
    %vm1433 = vweird.f32 %v1427
    %vm1434 = vmor %vm1432, %vm1433
    %v1435 = vsel %vm1434, %v1427, %v1431
    %v1436 = vand.u32 2147483647, %v1426
    %vm1437 = vcmp.eq.f32.partialorder %v1436, 8.507059e+37
    %v1438 = vand.u32 %v1426, 2147483648
    %v1439 = vor.u32 1.1754944e-38, %v1438
    %v1440 = vsel %vm1437, %v1439, %v1435
    %v1441 = vmul.f32 1.0, %v1440
    %v1442 = vtanh.pop %v1401
    %v1443 = vld [vmem:[#allocation4] sm:$0x3]
    %1445 = vrot.lane.b32.xlu0 %v1443, 32
    %v1446 = vpop.permute.xlu0 %1445
    %v1448 = vmul.f32 %v1441, %v1446
    %1450 = vrot.lane.b32.xlu0 %v1442, 32
    %v1451 = vpop.permute.xlu0 %1450
    %v1453 = vmul.f32 %v1441, %v1451
    %1455 = vrot.lane.b32.xlu0 %v1453, 32
    %v1456 = vpop.permute.xlu0 %1455
    %v1458 = vadd.f32 %v1448, %v1456
    %v1459 = vtanh.pop %v1458
    %1461 = vrot.lane.b32.xlu0 %v1459, 32
    %v1462 = vpop.permute.xlu0 %1461
    %v1464 = vmul.f32 %v1441, %v1462
    %1466 = vst [vmem:[#allocation1] ss:$4 sm:$0xff] %v1464
    %v1467 = vld.sshfl [vmem:[#allocation1] sm:$0xff pattern:$0x73625140]
    %1468 = vrot.lane.b32.xlu0 %v1467, 64
    %v1469 = vpop.permute.xlu0 %1468
    %1471 = vst.msk [vmem:[#allocation2] sm:$0x3] %vm210, %v1469
    %1473 = vst [vmem:[#allocation1] ss:$4 sm:$0xff] %v1458
    %v1474 = vld.sshfl [vmem:[#allocation1] sm:$0xff pattern:$0x73625140]
    %1475 = vrot.lane.b32.xlu0 %v1474, 96
    %v1476 = vpop.permute.xlu0 %1475
    %1478 = vst.msk [vmem:[#allocation4] sm:$0x3] %vm210, %v1476
    %v1479 = vpack.c.bf16 %v1464, %v1464
    %v1481 = vrot.slane %v1479, 3
    %v1484 = vsel %vm222, %v1479, %v1481
    %1486 = vrot.lane.b32.xlu0 %v1484, 64
    %v1487 = vpop.permute.xlu0 %1486
    %s1489 = scalar_lea.vmem [#allocation12], 7
    %1490 = vst.msk [vmem:[%s1489] sm:$0x1] %vm230, %v1487
    %v1491 = vxor.u32 %v1422, 2147483648
    %v1492 = vmul.f32 %v1491, 1.442695
    %v1493 = vpow.pop %v1492
    %v1494 = vadd.f32 %v1493, 1.0
    %v1495 = vrcp.pop %v1494
    %v1496 = vmul.f32 %v1494, %v1495
    %v1497 = vsub.f32 1.0, %v1496
    %v1498 = vmul.f32 %v1495, %v1497
    %v1499 = vadd.f32 %v1495, %v1498
    %vm1500 = vweird.f32 %v1494
    %vm1501 = vweird.f32 %v1495
    %vm1502 = vmor %vm1500, %vm1501
    %v1503 = vsel %vm1502, %v1495, %v1499
    %v1504 = vand.u32 2147483647, %v1494
    %vm1505 = vcmp.eq.f32.partialorder %v1504, 8.507059e+37
    %v1506 = vand.u32 %v1494, 2147483648
    %v1507 = vor.u32 1.1754944e-38, %v1506
    %v1508 = vsel %vm1505, %v1507, %v1503
    %v1509 = vmul.f32 1.0, %v1508
    %v1510 = vtanh.pop %v1422
    %v1511 = vld [vmem:[#allocation5] sm:$0x3]
    %1513 = vrot.lane.b32.xlu0 %v1511, 32
    %v1514 = vpop.permute.xlu0 %1513
    %v1516 = vmul.f32 %v1509, %v1514
    %1518 = vrot.lane.b32.xlu0 %v1510, 32
    %v1519 = vpop.permute.xlu0 %1518
    %v1521 = vmul.f32 %v1509, %v1519
    %1523 = vrot.lane.b32.xlu0 %v1521, 32
    %v1524 = vpop.permute.xlu0 %1523
    %v1526 = vadd.f32 %v1516, %v1524
    %v1527 = vtanh.pop %v1526
    %1529 = vrot.lane.b32.xlu0 %v1527, 32
    %v1530 = vpop.permute.xlu0 %1529
    %v1532 = vmul.f32 %v1509, %v1530
    %1534 = vst [vmem:[#allocation1] ss:$4 sm:$0xff] %v1532
    %v1535 = vld.sshfl [vmem:[#allocation1] sm:$0xff pattern:$0x73625140]
    %1536 = vrot.lane.b32.xlu0 %v1535, 64
    %v1537 = vpop.permute.xlu0 %1536
    %1539 = vst.msk [vmem:[#allocation3] sm:$0x3] %vm210, %v1537
    %1541 = vst [vmem:[#allocation1] ss:$4 sm:$0xff] %v1526
    %v1542 = vld.sshfl [vmem:[#allocation1] sm:$0xff pattern:$0x73625140]
    %1543 = vrot.lane.b32.xlu0 %v1542, 96
    %v1544 = vpop.permute.xlu0 %1543
    %1546 = vst.msk [vmem:[#allocation5] sm:$0x3] %vm210, %v1544
    %v1547 = vpack.c.bf16 %v1532, %v1532
    %v1549 = vrot.slane %v1547, 3
    %v1552 = vsel %vm222, %v1547, %v1549
    %1554 = vrot.lane.b32.xlu0 %v1552, 64
    %v1555 = vpop.permute.xlu0 %1554
    %1557 = vst.msk [vmem:[#allocation13] sm:$0x1] %vm230, %v1555
    // Predicated region
    $region30: #{tpu_custom_call.1} parent=1 // pred_check
      %p1558 = pneg %p76
    $region31: #{tpu_custom_call.1} parent=1 // pred_check_branch
      %1560 = sbr.rel (%p1558) target = $region33
    $region32: #{tpu_custom_call.1} parent=1 // pred_region
      %v1561 = vld [vmem:[#allocation2] sm:$0x3]
      %1562 = vst.msk [vmem:[#allocation15] sm:$0x3] %vm210, %v1561
      %v1563 = vld [vmem:[#allocation4] sm:$0x3]
      %1564 = vst.msk [vmem:[#allocation16] sm:$0x3] %vm210, %v1563
      %v1565 = vld [vmem:[#allocation3] sm:$0x3]
      %s1566 = scalar_lea.vmem [#allocation15], 2
      %1567 = vst.msk [vmem:[%s1566] sm:$0x3] %vm210, %v1565
      %v1568 = vld [vmem:[#allocation5] sm:$0x3]
      %s1569 = scalar_lea.vmem [#allocation16], 2
      %1570 = vst.msk [vmem:[%s1569] sm:$0x3] %vm210, %v1568
    $region33: #{tpu_custom_call.1} parent=1 // pred_fallthru
      _
    // Predicated region
    $region34: #{tpu_custom_call.1} parent=1 // pred_check
      _
    $region35: #{tpu_custom_call.1} parent=1 // pred_check_branch
      %1572 = sbr.rel (0) target = $region37
    $region36: #{tpu_custom_call.1} parent=1 // pred_region
      %1574 = vsyncadd [#allocation8], 0
      %s1575 = sshll.u32 [#allocation12], 4
      %s1576 = int_to_ptr.vmem [resolvable:$true] %s1575
      %s1577 = sshll.u32 %s3, 4
      %s1578 = int_to_ptr.hbm [resolvable:$true] %s1577
      %1583 = dma.vmem_to_hbm [thread:$0]  %s1576, 128, %s1578, [#allocation8], 16, 16, 1
    $region37: #{tpu_custom_call.1} parent=1 // pred_fallthru
      _
    // Predicated region
    $region38: #{tpu_custom_call.1} parent=1 // pred_check
      _
    $region39: #{tpu_custom_call.1} parent=1 // pred_check_branch
      %1585 = sbr.rel (0) target = $region41
    $region40: #{tpu_custom_call.1} parent=1 // pred_region
      %s1586 = ssub.s32 0, 0
      %s1587 = smul.u32 8, %s1586
      %1589 = vsyncadd [#allocation14], 0
      %s1590 = scalar_lea.hbm %s4, %s1587
      %s1591 = sshll.u32 [#allocation13], 4
      %s1592 = int_to_ptr.vmem [resolvable:$true] %s1591
      %s1593 = sshll.u32 %s1590, 4
      %s1594 = int_to_ptr.hbm [resolvable:$true] %s1593
      %1599 = dma.vmem_to_hbm [thread:$0]  %s1592, 128, %s1594, [#allocation14], 16, 16, 1
    $region41: #{tpu_custom_call.1} parent=1 // pred_fallthru
      _
    // Predicated region
    $region42: #{tpu_custom_call.1} parent=1 // pred_check
      _
    $region43: #{tpu_custom_call.1} parent=1 // pred_check_branch
      %1601 = sbr.rel (0) target = $region45
    $region44: #{tpu_custom_call.1} parent=1 // pred_region
      %1603 = vsyncadd [#allocation14], 0
      %s1604 = sshll.u32 [#allocation15], 4
      %s1605 = int_to_ptr.vmem [resolvable:$true] %s1604
      %s1606 = sshll.u32 %s5, 4
      %s1607 = int_to_ptr.hbm [resolvable:$true] %s1606
      %1612 = dma.vmem_to_hbm [thread:$0]  %s1605, 64, %s1607, [#allocation14], 32, 32, 2
    $region45: #{tpu_custom_call.1} parent=1 // pred_fallthru
      _
    // Predicated region
    $region46: #{tpu_custom_call.1} parent=1 // pred_check
      _
    $region47: #{tpu_custom_call.1} parent=1 // pred_check_branch
      %1614 = sbr.rel (0) target = $region49
    $region48: #{tpu_custom_call.1} parent=1 // pred_region
      %1616 = vsyncadd [#allocation17], 0
      %s1617 = sshll.u32 [#allocation16], 4
      %s1618 = int_to_ptr.vmem [resolvable:$true] %s1617
      %s1619 = sshll.u32 %s6, 4
      %s1620 = int_to_ptr.hbm [resolvable:$true] %s1619
      %1625 = dma.vmem_to_hbm [thread:$0]  %s1618, 64, %s1620, [#allocation17], 32, 32, 2
    $region49: #{tpu_custom_call.1} parent=1 // pred_fallthru
      _
    // Predicated region
    $region50: #{tpu_custom_call.1} parent=1 // pred_check
      _
    $region51: #{tpu_custom_call.1} parent=1 // pred_check_branch
      %1627 = sbr.rel (0) target = $region53
    $region52: #{tpu_custom_call.1} parent=1 // pred_region
      %1629 = dma.done [#allocation8], 128
    $region53: #{tpu_custom_call.1} parent=1 // pred_fallthru
      _
    // Predicated region
    $region54: #{tpu_custom_call.1} parent=1 // pred_check
      _
    $region55: #{tpu_custom_call.1} parent=1 // pred_check_branch
      %1631 = sbr.rel (0) target = $region57
    $region56: #{tpu_custom_call.1} parent=1 // pred_region
      %1633 = dma.done [#allocation14], 128
    $region57: #{tpu_custom_call.1} parent=1 // pred_fallthru
      _
    // Predicated region
    $region58: #{tpu_custom_call.1} parent=1 // pred_check
      _
    $region59: #{tpu_custom_call.1} parent=1 // pred_check_branch
      %1635 = sbr.rel (0) target = $region61
    $region60: #{tpu_custom_call.1} parent=1 // pred_region
      %1637 = dma.done [#allocation14], 64
    $region61: #{tpu_custom_call.1} parent=1 // pred_fallthru
      _
    // Predicated region
    $region62: #{tpu_custom_call.1} parent=1 // pred_check
      _
    $region63: #{tpu_custom_call.1} parent=1 // pred_check_branch
      %1639 = sbr.rel (0) target = $region65
    $region64: #{tpu_custom_call.1} parent=1 // pred_region
      %1641 = dma.done [#allocation17], 64
    $region65: #{tpu_custom_call.1} parent=1 // pred_fallthru
      _
    %1642 = vsyncpa [#allocation7], 1
    %1643 = vsyncpa [#allocation10], 1
    %1644 = vsyncpa [#allocation8], 1
    %1645 = vsyncpa [#allocation14], 1
    %1646 = vsyncpa [#allocation17], 1

</llo_original>
